<compile_context>
chip_gen: v7x
topology: tpu7x:2x2x1
jax: 0.10.0
libtpu: 0.0.40
codegen_flags: <defaults>
</compile_context>

<pallas_src>
import functools

import jax
import jax.numpy as jnp
from jax.experimental import pallas as pl
from jax.experimental.pallas import tpu as pltpu

_LANE = 128
_SUB = 8
# Tile granularity in anchors: rt = tile // 128 stays a multiple of 32 so (rt, 128) blocks are
# legal for f32 (8,128), bf16 (16,128) and int8 (32,128) tilings alike.
_ANCHOR_QUANT = 32 * _LANE  # 4096


def _cdiv(a, b):
    return (a + b - 1) // b


def _round_up(a, b):
    return _cdiv(a, b) * b


def _losses_kernel(flt_ref,      # (F, rt, 128)  float slab: [cls C | loc L | dir D | tgt L]
                   int_ref,      # (2, rt, 128)  int32 slab: [anchor labels | dir labels]
                   out_ref,      # (1, 8, 128)   f32 lane-packed partial sums for this part
                   acc_cls,      # VMEM (8, 128) f32
                   acc_loc,      # VMEM (8, 128) f32
                   acc_dir,      # VMEM (8, 128) f32
                   *, num_classes, num_loc, num_dir, alpha, gamma, smooth_l1_beta):
    t = pl.program_id(1)
    num_t = pl.num_programs(1)
    C, L, D = num_classes, num_loc, num_dir
    rt = flt_ref.shape[1]

    @pl.when(t == 0)
    def _():
        acc_cls[...] = jnp.zeros_like(acc_cls)
        acc_loc[...] = jnp.zeros_like(acc_loc)
        acc_dir[...] = jnp.zeros_like(acc_dir)

    def tile_sum(x):
        # (rt, 128) -> (8, 128): cross-vreg VALU adds only; the intra-vreg (sublane/lane)
        # reduce is deferred to the pl.when(last) finalize so the XLU stays idle in the loop.
        return x.reshape(rt // _SUB, _SUB, _LANE).sum(axis=0)

    # ------------------ SmoothL1 localization (sum over all elements) --------------------
    l1_sum = None
    for j in range(L):                                       # static loop over 7 box channels
        d = flt_ref[C + j].astype(jnp.float32) - flt_ref[C + L + D + j].astype(jnp.float32)
        a = jnp.abs(d)
        quad = (0.5 / smooth_l1_beta) * d * d                # divide folded into constant mul
        lin = a - 0.5 * smooth_l1_beta
        li = jnp.where(a < smooth_l1_beta, quad, lin)
        l1_sum = li if l1_sum is None else l1_sum + li
    acc_loc[...] += tile_sum(l1_sum)

    # ------------------ focal-weighted binary cross-entropy classification ---------------
    lab = int_ref[0]                                         # (rt, 128) int32
    cls_elem = None
    for c in range(C):                                       # static loop over classes
        xc = flt_ref[c].astype(jnp.float32)
        # shared softplus term log(1 + exp(-|x|)): 2 EUP ops for both log-sigmoids
        log_term = jnp.log(1.0 + jnp.exp(-jnp.abs(xc)))
        log_p = jnp.maximum(jnp.minimum(xc, 0.0) - log_term, -100.0)       # log sigmoid(x)
        log_1mp = jnp.maximum(-jnp.maximum(xc, 0.0) - log_term, -100.0)    # log(1 - sigmoid)
        p = jnp.exp(log_p)
        q = 1.0 - p
        if gamma == 2:
            pg, qg = p * p, q * q
        else:
            pg = jnp.power(p, jnp.float32(gamma))
            qg = jnp.power(q, jnp.float32(gamma))
        # boolean select instead of one-hot arithmetic blend (drops ~8-10 VALU ops/class/elem)
        contrib = jnp.where(lab == c,
                            alpha * qg * (-log_p),
                            (1.0 - alpha) * pg * (-log_1mp))
        cls_elem = contrib if cls_elem is None else cls_elem + contrib
    acc_cls[...] += tile_sum(cls_elem)

    # ------------------ direction cross-entropy (sum; mean applied in wrapper) -----------
    dlab = int_ref[1]                                        # (rt, 128) int32
    if D == 2:
        d0 = flt_ref[C + L].astype(jnp.float32)
        d1 = flt_ref[C + L + 1].astype(jnp.float32)
        picked = jnp.where(dlab == 0, d0, d1)
        z = (d0 + d1 - picked) - picked                      # other - picked
        dir_elem = jnp.maximum(z, 0.0) + jnp.log(1.0 + jnp.exp(-jnp.abs(z)))  # softplus(z)
    else:
        dch = [flt_ref[C + L + j].astype(jnp.float32) for j in range(D)]
        m = dch[0]
        for j in range(1, D):
            m = jnp.maximum(m, dch[j])
        ssum = jnp.zeros_like(m)
        picked = jnp.zeros_like(m)
        for j in range(D):
            ssum = ssum + jnp.exp(dch[j] - m)
            picked = picked + jnp.where(dlab == j, dch[j], 0.0)
        dir_elem = m + jnp.log(ssum) - picked
    acc_dir[...] += tile_sum(dir_elem)

    # ------------------ finalize this part: lane-packed partial sums ---------------------
    @pl.when(t == num_t - 1)
    def _():
        cls_s = jnp.sum(acc_cls[...])
        loc_s = jnp.sum(acc_loc[...])
        dir_s = jnp.sum(acc_dir[...])
        lane = jax.lax.broadcasted_iota(jnp.int32, out_ref.shape, 2)
        out_ref[...] = jnp.where(lane == 0, cls_s,
                       jnp.where(lane == 1, loc_s,
                       jnp.where(lane == 2, dir_s, 0.0)))


def _pack_lane_dense(arrays, pad_values, n, n_pad, dtype):
    """Anchor-major (N,)/(N,K_i) arrays -> one channel-major (sum K_i, n_pad//128, 128) slab.

    Downcasts BEFORE the transpose, coalesces every channel into a single concat/transpose
    pass, and pads the anchor axis with per-channel loss-neutral values.
    """
    cols, pad_col = [], []
    for a, pv in zip(arrays, pad_values):
        if a.ndim == 1:
            a = a[:, None]
        cols.append(a.astype(dtype))
        pv = jnp.asarray(pv, dtype=dtype).reshape(-1)
        if pv.shape[0] != a.shape[1]:
            pv = jnp.broadcast_to(pv, (a.shape[1],))
        pad_col.append(pv)
    x = cols[0] if len(cols) == 1 else jnp.concatenate(cols, axis=1)     # (N, F)
    xt = x.T                                                             # (F, N)
    f = xt.shape[0]
    pad_cols = n_pad - n
    if pad_cols:
        pad_block = jnp.broadcast_to(jnp.concatenate(pad_col)[:, None], (f, pad_cols))
        xt = jnp.concatenate([xt, pad_block], axis=1)
    return xt.reshape(f, n_pad // _LANE, _LANE)


def _default_num_parts():
    """2 parts on chips with two TensorCores behind one device (v7x, v4/v5p), else 1."""
    try:
        kind = (jax.devices()[0].device_kind or "").lower()
    except Exception:
        return 1
    return 2 if any(tag in kind for tag in ("v7", "v4", "v5p")) else 1


def pointpillars_losses(pred_bbox_cls, pred_bbox_loc, pred_bbox_dir,
                        anchor_labels, num_cls_pos, anchor_bbox_loc,
                        anchor_bbox_dir_labels, num_classes=3,
                        alpha=0.25, gamma=2, beta_cls=1.0, beta_loc=2.0, beta_dir=0.2,
                        smooth_l1_beta=1.0 / 9.0,
                        anchors_per_tile=32768, num_parts=None,
                        input_dtype=jnp.bfloat16):
    N, C = pred_bbox_cls.shape
    assert C == num_classes
    L = pred_bbox_loc.shape[1]
    D = pred_bbox_dir.shape[1]
    F_CH = C + L + D + L

    if num_parts is None:
        num_parts = _default_num_parts()

    # --- tiling: tile quantized to 4096 anchors (rt % 32 == 0); parts feed the parallel axis ---
    tile = max(_ANCHOR_QUANT, (anchors_per_tile // _ANCHOR_QUANT) * _ANCHOR_QUANT)
    tile = min(tile, _round_up(N, _ANCHOR_QUANT))
    tiles_total = _cdiv(N, tile)
    num_parts = max(1, min(num_parts, tiles_total))
    tiles_per_part = _cdiv(tiles_total, num_parts)
    n_pad = num_parts * tiles_per_part * tile
    rt = tile // _LANE

    in_dtype = jnp.dtype(input_dtype) if input_dtype is not None else pred_bbox_cls.dtype

    # --- lane-dense, channel-major repack with loss-neutral padding; 2 coalesced slabs --------
    flt_r = _pack_lane_dense(
        [pred_bbox_cls, pred_bbox_loc, pred_bbox_dir, anchor_bbox_loc],
        [-40.0, 0.0, [0.0] + [-40.0] * (D - 1), 0.0],
        N, n_pad, in_dtype)
    # TODO(synk): labels could be packed as int8 (rt % 32 == 0 makes it legal) for another ~8%
    # HBM cut on v5e; kept int32 here for robustness.
    int_r = _pack_lane_dense(
        [anchor_labels, anchor_bbox_dir_labels],
        [num_classes, 0],
        N, n_pad, jnp.int32)

    def tile_map(p, t):
        return (0, p * tiles_per_part + t, 0)

    in_specs = [pl.BlockSpec((F_CH, rt, _LANE), tile_map),
                pl.BlockSpec((2, rt, _LANE), tile_map)]
    out_spec = pl.BlockSpec((1, _SUB, _LANE), lambda p, t: (p, 0, 0))

    bytes_in = int(flt_r.size) * flt_r.dtype.itemsize + int(int_r.size) * int_r.dtype.itemsize
    cost = pl.CostEstimate(
        flops=int(n_pad * (C * 22 + L * 6 + D * 8 + 6)),
        transcendentals=int(n_pad * (3 * C + (2 if D == 2 else D + 1))),
        bytes_accessed=int(bytes_in + num_parts * _SUB * _LANE * 4))

    kernel = functools.partial(
        _losses_kernel, num_classes=C, num_loc=L, num_dir=D,
        alpha=float(alpha), gamma=gamma, smooth_l1_beta=float(smooth_l1_beta))

    # 48 MiB scoped VMEM: above the 16/32 MiB v5e/v6e defaults so the larger double-buffered
    # blocks fit; below v7x's 64 MiB physical VMEM.
    partials = pl.pallas_call(
        kernel,
        out_shape=jax.ShapeDtypeStruct((num_parts, _SUB, _LANE), jnp.float32),
        grid_spec=pltpu.PrefetchScalarGridSpec(
            num_scalar_prefetch=0,
            grid=(num_parts, tiles_per_part),
            in_specs=in_specs,
            out_specs=out_spec,
            scratch_shapes=[pltpu.VMEM((_SUB, _LANE), jnp.float32)] * 3),
        compiler_params=pltpu.CompilerParams(
            dimension_semantics=("parallel", "arbitrary"),
            vmem_limit_bytes=48 * 1024 * 1024),
        cost_estimate=cost,
    )(flt_r, int_r)

    # --- tiny epilogue: combine per-part partial sums, divide, apply betas --------------------
    cls_sum = jnp.sum(partials[:, 0, 0])
    loc_sum = jnp.sum(partials[:, 0, 1])
    dir_sum = jnp.sum(partials[:, 0, 2])

    num_pos = jnp.asarray(num_cls_pos, jnp.float32)
    # TODO(synk): like the PyTorch reference, no guard for num_cls_pos == 0 (inf/nan).
    l_cls = cls_sum / num_pos
    l_loc = loc_sum / jnp.float32(N)
    l_dir = dir_sum / jnp.float32(N)
    total = beta_loc * l_loc + beta_cls * l_cls + beta_dir * l_dir
    return {'cls_loss': l_cls, 'loc_loss': l_loc,
            'dir_cls_loss': l_dir, 'total_loss': total}


def _reference_losses(pred_bbox_cls, pred_bbox_loc, pred_bbox_dir,
                      anchor_labels, num_cls_pos, anchor_bbox_loc,
                      anchor_bbox_dir_labels, num_classes=3,
                      alpha=0.25, gamma=2, beta_cls=1.0, beta_loc=2.0, beta_dir=0.2,
                      smooth_l1_beta=1.0 / 9.0):
    # pure-JAX reference mirroring the PyTorch forward
    b = smooth_l1_beta
    d = pred_bbox_loc - anchor_bbox_loc
    l1 = jnp.where(jnp.abs(d) < b, 0.5 * d * d / b, jnp.abs(d) - 0.5 * b)
    l_loc = l1.sum() / pred_bbox_loc.shape[0]

    onehot = jax.nn.one_hot(anchor_labels, num_classes + 1)[:, :num_classes]
    p = jax.nn.sigmoid(pred_bbox_cls)
    weight = alpha * (1 - p) ** gamma * onehot + (1 - alpha) * p ** gamma * (1 - onehot)
    bce = -(onehot * jnp.maximum(jnp.log(p), -100.0)
            + (1 - onehot) * jnp.maximum(jnp.log(1 - p), -100.0))
    l_cls = (bce * weight).sum() / num_cls_pos

    logz = jax.nn.logsumexp(pred_bbox_dir, axis=1)
    picked = jnp.take_along_axis(pred_bbox_dir, anchor_bbox_dir_labels[:, None], axis=1)[:, 0]
    l_dir = (logz - picked).mean()

    total = beta_loc * l_loc + beta_cls * l_cls + beta_dir * l_dir
    return {'cls_loss': l_cls, 'loc_loss': l_loc, 'dir_cls_loss': l_dir, 'total_loss': total}


if __name__ == "__main__":
    key = jax.random.PRNGKey(0)
    k1, k2, k3, k4, k5, k6 = jax.random.split(key, 6)

    # small, deliberately non-multiple-of-4096 anchor count to exercise padding + tiling
    N, NUM_CLASSES = 4133, 3
    pred_bbox_cls = jax.random.normal(k1, (N, NUM_CLASSES), jnp.float32)
    pred_bbox_loc = jax.random.normal(k2, (N, 7), jnp.float32)
    pred_bbox_dir = jax.random.normal(k3, (N, 2), jnp.float32)
    anchor_bbox_loc = jax.random.normal(k4, (N, 7), jnp.float32)
    anchor_labels = jax.random.randint(k5, (N,), 0, NUM_CLASSES + 1, jnp.int32)
    anchor_bbox_dir_labels = jax.random.randint(k6, (N,), 0, 2, jnp.int32)
    num_cls_pos = jnp.maximum(jnp.sum(anchor_labels < NUM_CLASSES), 1).astype(jnp.float32)

    ref = _reference_losses(pred_bbox_cls, pred_bbox_loc, pred_bbox_dir,
                            anchor_labels, num_cls_pos, anchor_bbox_loc,
                            anchor_bbox_dir_labels, num_classes=NUM_CLASSES)

    # f32 input path: tight check against the reference
    run_f32 = jax.jit(functools.partial(pointpillars_losses, num_classes=NUM_CLASSES,
                                        input_dtype=jnp.float32))
    out32 = run_f32(pred_bbox_cls, pred_bbox_loc, pred_bbox_dir, anchor_labels,
                    num_cls_pos, anchor_bbox_loc, anchor_bbox_dir_labels)
    out32 = jax.tree_util.tree_map(jax.block_until_ready, out32)
    for name in ('cls_loss', 'loc_loss', 'dir_cls_loss', 'total_loss'):
        assert jnp.allclose(out32[name], ref[name], rtol=1e-4, atol=1e-4), (
            'f32', name, out32[name], ref[name])

    # default bf16 input path (halved HBM traffic); loss math stays f32 after in-kernel upcast
    run_bf16 = jax.jit(functools.partial(pointpillars_losses, num_classes=NUM_CLASSES))
    out16 = run_bf16(pred_bbox_cls, pred_bbox_loc, pred_bbox_dir, anchor_labels,
                     num_cls_pos, anchor_bbox_loc, anchor_bbox_dir_labels)
    out16 = jax.tree_util.tree_map(jax.block_until_ready, out16)
    for name in ('cls_loss', 'loc_loss', 'dir_cls_loss', 'total_loss'):
        assert jnp.allclose(out16[name], ref[name], rtol=2e-2, atol=2e-2), (
            'bf16', name, out16[name], ref[name])

    print("KERNEL_OK")
</pallas_src>

<mosaic_0001>
module attributes {stable_mosaic.version = 11 : i64} {
  func.func @_losses_kernel(%arg0: i32, %arg1: i32, %arg2: memref<19x64x128xf32, #tpu.memory_space<vmem>>, %arg3: memref<2x64x128xi32, #tpu.memory_space<vmem>>, %arg4: memref<1x8x128xf32, #tpu.memory_space<vmem>>, %arg5: memref<8x128xf32, #tpu.memory_space<vmem>>, %arg6: memref<8x128xf32, #tpu.memory_space<vmem>>, %arg7: memref<8x128xf32, #tpu.memory_space<vmem>>) attributes {dimension_semantics = [#tpu.dimension_semantics<parallel>, #tpu.dimension_semantics<arbitrary>], iteration_bounds = array<i64: 1, 1>, scalar_prefetch = 0 : i64, scratch_operands = 3 : i64, tpu.core_type = #tpu.core_type<tc>, window_params = [{transform_indices = @transform_0, window_bounds = array<i64: 19, 64, 128>}, {transform_indices = @transform_1, window_bounds = array<i64: 2, 64, 128>}, {transform_indices = @transform_2, window_bounds = array<i64: 1, 8, 128>}]} {
    %c0_i32 = arith.constant 0 : i32
    %0 = arith.cmpi eq, %arg1, %c0_i32 : i32
    %1 = arith.extui %0 : i1 to i32
    %c0_i32_0 = arith.constant 0 : i32
    %2 = arith.cmpi ne, %1, %c0_i32_0 : i32
    scf.if %2 {
      %cst_123 = arith.constant 0.000000e+00 : f32
      %268 = vector.broadcast %cst_123 : f32 to vector<8x128xf32>
      %c0_124 = arith.constant 0 : index
      %c0_125 = arith.constant 0 : index
      %269 = vector.load %arg5[%c0_124, %c0_125] : memref<8x128xf32, #tpu.memory_space<vmem>>, vector<8x128xf32>
      tpu.vector_store %arg5[%c0_124, %c0_125], %268 {strides = array<i32>} : memref<8x128xf32, #tpu.memory_space<vmem>>, vector<8x128xf32>,
      %cst_126 = arith.constant 0.000000e+00 : f32
      %270 = vector.broadcast %cst_126 : f32 to vector<8x128xf32>
      %c0_127 = arith.constant 0 : index
      %c0_128 = arith.constant 0 : index
      %271 = vector.load %arg6[%c0_127, %c0_128] : memref<8x128xf32, #tpu.memory_space<vmem>>, vector<8x128xf32>
      tpu.vector_store %arg6[%c0_127, %c0_128], %270 {strides = array<i32>} : memref<8x128xf32, #tpu.memory_space<vmem>>, vector<8x128xf32>,
      %cst_129 = arith.constant 0.000000e+00 : f32
      %272 = vector.broadcast %cst_129 : f32 to vector<8x128xf32>
      %c0_130 = arith.constant 0 : index
      %c0_131 = arith.constant 0 : index
      %273 = vector.load %arg7[%c0_130, %c0_131] : memref<8x128xf32, #tpu.memory_space<vmem>>, vector<8x128xf32>
      tpu.vector_store %arg7[%c0_130, %c0_131], %272 {strides = array<i32>} : memref<8x128xf32, #tpu.memory_space<vmem>>, vector<8x128xf32>,
    } else {
    }
    %c3 = arith.constant 3 : index
    %c0 = arith.constant 0 : index
    %c0_1 = arith.constant 0 : index
    %3 = vector.load %arg2[%c3, %c0, %c0_1] : memref<19x64x128xf32, #tpu.memory_space<vmem>>, vector<1x64x128xf32>
    %4 = vector.shape_cast %3 : vector<1x64x128xf32> to vector<64x128xf32>
    %c12 = arith.constant 12 : index
    %c0_2 = arith.constant 0 : index
    %c0_3 = arith.constant 0 : index
    %5 = vector.load %arg2[%c12, %c0_2, %c0_3] : memref<19x64x128xf32, #tpu.memory_space<vmem>>, vector<1x64x128xf32>
    %6 = vector.shape_cast %5 : vector<1x64x128xf32> to vector<64x128xf32>
    %7 = arith.subf %4, %6 : vector<64x128xf32>
    %8 = math.absf %7 : vector<64x128xf32>
    %cst = arith.constant 4.500000e+00 : f32
    %9 = vector.broadcast %cst : f32 to vector<64x128xf32>
    %10 = arith.mulf %9, %7 : vector<64x128xf32>
    %11 = arith.mulf %10, %7 : vector<64x128xf32>
    %cst_4 = arith.constant 0.055555556 : f32
    %12 = vector.broadcast %cst_4 : f32 to vector<64x128xf32>
    %13 = arith.subf %8, %12 : vector<64x128xf32>
    %cst_5 = arith.constant 0.111111112 : f32
    %14 = vector.broadcast %cst_5 : f32 to vector<64x128xf32>
    %15 = arith.cmpf olt, %8, %14 : vector<64x128xf32>
    %16 = arith.select %15, %11, %13 : vector<64x128xi1>, vector<64x128xf32>
    %c4 = arith.constant 4 : index
    %c0_6 = arith.constant 0 : index
    %c0_7 = arith.constant 0 : index
    %17 = vector.load %arg2[%c4, %c0_6, %c0_7] : memref<19x64x128xf32, #tpu.memory_space<vmem>>, vector<1x64x128xf32>
    %18 = vector.shape_cast %17 : vector<1x64x128xf32> to vector<64x128xf32>
    %c13 = arith.constant 13 : index
    %c0_8 = arith.constant 0 : index
    %c0_9 = arith.constant 0 : index
    %19 = vector.load %arg2[%c13, %c0_8, %c0_9] : memref<19x64x128xf32, #tpu.memory_space<vmem>>, vector<1x64x128xf32>
    %20 = vector.shape_cast %19 : vector<1x64x128xf32> to vector<64x128xf32>
    %21 = arith.subf %18, %20 : vector<64x128xf32>
    %22 = math.absf %21 : vector<64x128xf32>
    %cst_10 = arith.constant 4.500000e+00 : f32
    %23 = vector.broadcast %cst_10 : f32 to vector<64x128xf32>
    %24 = arith.mulf %23, %21 : vector<64x128xf32>
    %25 = arith.mulf %24, %21 : vector<64x128xf32>
    %cst_11 = arith.constant 0.055555556 : f32
    %26 = vector.broadcast %cst_11 : f32 to vector<64x128xf32>
    %27 = arith.subf %22, %26 : vector<64x128xf32>
    %cst_12 = arith.constant 0.111111112 : f32
    %28 = vector.broadcast %cst_12 : f32 to vector<64x128xf32>
    %29 = arith.cmpf olt, %22, %28 : vector<64x128xf32>
    %30 = arith.select %29, %25, %27 : vector<64x128xi1>, vector<64x128xf32>
    %31 = arith.addf %16, %30 : vector<64x128xf32>
    %c5 = arith.constant 5 : index
    %c0_13 = arith.constant 0 : index
    %c0_14 = arith.constant 0 : index
    %32 = vector.load %arg2[%c5, %c0_13, %c0_14] : memref<19x64x128xf32, #tpu.memory_space<vmem>>, vector<1x64x128xf32>
    %33 = vector.shape_cast %32 : vector<1x64x128xf32> to vector<64x128xf32>
    %c14 = arith.constant 14 : index
    %c0_15 = arith.constant 0 : index
    %c0_16 = arith.constant 0 : index
    %34 = vector.load %arg2[%c14, %c0_15, %c0_16] : memref<19x64x128xf32, #tpu.memory_space<vmem>>, vector<1x64x128xf32>
    %35 = vector.shape_cast %34 : vector<1x64x128xf32> to vector<64x128xf32>
    %36 = arith.subf %33, %35 : vector<64x128xf32>
    %37 = math.absf %36 : vector<64x128xf32>
    %cst_17 = arith.constant 4.500000e+00 : f32
    %38 = vector.broadcast %cst_17 : f32 to vector<64x128xf32>
    %39 = arith.mulf %38, %36 : vector<64x128xf32>
    %40 = arith.mulf %39, %36 : vector<64x128xf32>
    %cst_18 = arith.constant 0.055555556 : f32
    %41 = vector.broadcast %cst_18 : f32 to vector<64x128xf32>
    %42 = arith.subf %37, %41 : vector<64x128xf32>
    %cst_19 = arith.constant 0.111111112 : f32
    %43 = vector.broadcast %cst_19 : f32 to vector<64x128xf32>
    %44 = arith.cmpf olt, %37, %43 : vector<64x128xf32>
    %45 = arith.select %44, %40, %42 : vector<64x128xi1>, vector<64x128xf32>
    %46 = arith.addf %31, %45 : vector<64x128xf32>
    %c6 = arith.constant 6 : index
    %c0_20 = arith.constant 0 : index
    %c0_21 = arith.constant 0 : index
    %47 = vector.load %arg2[%c6, %c0_20, %c0_21] : memref<19x64x128xf32, #tpu.memory_space<vmem>>, vector<1x64x128xf32>
    %48 = vector.shape_cast %47 : vector<1x64x128xf32> to vector<64x128xf32>
    %c15 = arith.constant 15 : index
    %c0_22 = arith.constant 0 : index
    %c0_23 = arith.constant 0 : index
    %49 = vector.load %arg2[%c15, %c0_22, %c0_23] : memref<19x64x128xf32, #tpu.memory_space<vmem>>, vector<1x64x128xf32>
    %50 = vector.shape_cast %49 : vector<1x64x128xf32> to vector<64x128xf32>
    %51 = arith.subf %48, %50 : vector<64x128xf32>
    %52 = math.absf %51 : vector<64x128xf32>
    %cst_24 = arith.constant 4.500000e+00 : f32
    %53 = vector.broadcast %cst_24 : f32 to vector<64x128xf32>
    %54 = arith.mulf %53, %51 : vector<64x128xf32>
    %55 = arith.mulf %54, %51 : vector<64x128xf32>
    %cst_25 = arith.constant 0.055555556 : f32
    %56 = vector.broadcast %cst_25 : f32 to vector<64x128xf32>
    %57 = arith.subf %52, %56 : vector<64x128xf32>
    %cst_26 = arith.constant 0.111111112 : f32
    %58 = vector.broadcast %cst_26 : f32 to vector<64x128xf32>
    %59 = arith.cmpf olt, %52, %58 : vector<64x128xf32>
    %60 = arith.select %59, %55, %57 : vector<64x128xi1>, vector<64x128xf32>
    %61 = arith.addf %46, %60 : vector<64x128xf32>
    %c7 = arith.constant 7 : index
    %c0_27 = arith.constant 0 : index
    %c0_28 = arith.constant 0 : index
    %62 = vector.load %arg2[%c7, %c0_27, %c0_28] : memref<19x64x128xf32, #tpu.memory_space<vmem>>, vector<1x64x128xf32>
    %63 = vector.shape_cast %62 : vector<1x64x128xf32> to vector<64x128xf32>
    %c16 = arith.constant 16 : index
    %c0_29 = arith.constant 0 : index
    %c0_30 = arith.constant 0 : index
    %64 = vector.load %arg2[%c16, %c0_29, %c0_30] : memref<19x64x128xf32, #tpu.memory_space<vmem>>, vector<1x64x128xf32>
    %65 = vector.shape_cast %64 : vector<1x64x128xf32> to vector<64x128xf32>
    %66 = arith.subf %63, %65 : vector<64x128xf32>
    %67 = math.absf %66 : vector<64x128xf32>
    %cst_31 = arith.constant 4.500000e+00 : f32
    %68 = vector.broadcast %cst_31 : f32 to vector<64x128xf32>
    %69 = arith.mulf %68, %66 : vector<64x128xf32>
    %70 = arith.mulf %69, %66 : vector<64x128xf32>
    %cst_32 = arith.constant 0.055555556 : f32
    %71 = vector.broadcast %cst_32 : f32 to vector<64x128xf32>
    %72 = arith.subf %67, %71 : vector<64x128xf32>
    %cst_33 = arith.constant 0.111111112 : f32
    %73 = vector.broadcast %cst_33 : f32 to vector<64x128xf32>
    %74 = arith.cmpf olt, %67, %73 : vector<64x128xf32>
    %75 = arith.select %74, %70, %72 : vector<64x128xi1>, vector<64x128xf32>
    %76 = arith.addf %61, %75 : vector<64x128xf32>
    %c8 = arith.constant 8 : index
    %c0_34 = arith.constant 0 : index
    %c0_35 = arith.constant 0 : index
    %77 = vector.load %arg2[%c8, %c0_34, %c0_35] : memref<19x64x128xf32, #tpu.memory_space<vmem>>, vector<1x64x128xf32>
    %78 = vector.shape_cast %77 : vector<1x64x128xf32> to vector<64x128xf32>
    %c17 = arith.constant 17 : index
    %c0_36 = arith.constant 0 : index
    %c0_37 = arith.constant 0 : index
    %79 = vector.load %arg2[%c17, %c0_36, %c0_37] : memref<19x64x128xf32, #tpu.memory_space<vmem>>, vector<1x64x128xf32>
    %80 = vector.shape_cast %79 : vector<1x64x128xf32> to vector<64x128xf32>
    %81 = arith.subf %78, %80 : vector<64x128xf32>
    %82 = math.absf %81 : vector<64x128xf32>
    %cst_38 = arith.constant 4.500000e+00 : f32
    %83 = vector.broadcast %cst_38 : f32 to vector<64x128xf32>
    %84 = arith.mulf %83, %81 : vector<64x128xf32>
    %85 = arith.mulf %84, %81 : vector<64x128xf32>
    %cst_39 = arith.constant 0.055555556 : f32
    %86 = vector.broadcast %cst_39 : f32 to vector<64x128xf32>
    %87 = arith.subf %82, %86 : vector<64x128xf32>
    %cst_40 = arith.constant 0.111111112 : f32
    %88 = vector.broadcast %cst_40 : f32 to vector<64x128xf32>
    %89 = arith.cmpf olt, %82, %88 : vector<64x128xf32>
    %90 = arith.select %89, %85, %87 : vector<64x128xi1>, vector<64x128xf32>
    %91 = arith.addf %76, %90 : vector<64x128xf32>
    %c9 = arith.constant 9 : index
    %c0_41 = arith.constant 0 : index
    %c0_42 = arith.constant 0 : index
    %92 = vector.load %arg2[%c9, %c0_41, %c0_42] : memref<19x64x128xf32, #tpu.memory_space<vmem>>, vector<1x64x128xf32>
    %93 = vector.shape_cast %92 : vector<1x64x128xf32> to vector<64x128xf32>
    %c18 = arith.constant 18 : index
    %c0_43 = arith.constant 0 : index
    %c0_44 = arith.constant 0 : index
    %94 = vector.load %arg2[%c18, %c0_43, %c0_44] : memref<19x64x128xf32, #tpu.memory_space<vmem>>, vector<1x64x128xf32>
    %95 = vector.shape_cast %94 : vector<1x64x128xf32> to vector<64x128xf32>
    %96 = arith.subf %93, %95 : vector<64x128xf32>
    %97 = math.absf %96 : vector<64x128xf32>
    %cst_45 = arith.constant 4.500000e+00 : f32
    %98 = vector.broadcast %cst_45 : f32 to vector<64x128xf32>
    %99 = arith.mulf %98, %96 : vector<64x128xf32>
    %100 = arith.mulf %99, %96 : vector<64x128xf32>
    %cst_46 = arith.constant 0.055555556 : f32
    %101 = vector.broadcast %cst_46 : f32 to vector<64x128xf32>
    %102 = arith.subf %97, %101 : vector<64x128xf32>
    %cst_47 = arith.constant 0.111111112 : f32
    %103 = vector.broadcast %cst_47 : f32 to vector<64x128xf32>
    %104 = arith.cmpf olt, %97, %103 : vector<64x128xf32>
    %105 = arith.select %104, %100, %102 : vector<64x128xi1>, vector<64x128xf32>
    %106 = arith.addf %91, %105 : vector<64x128xf32>
    %c0_48 = arith.constant 0 : index
    %c0_49 = arith.constant 0 : index
    %107 = vector.load %arg6[%c0_48, %c0_49] : memref<8x128xf32, #tpu.memory_space<vmem>>, vector<8x128xf32>
    %108 = vector.shape_cast %106 : vector<64x128xf32> to vector<8x8x128xf32>
    %cst_50 = arith.constant dense<0.000000e+00> : vector<8x128xf32>
    %109 = vector.multi_reduction <add>, %108, %cst_50 [0] : vector<8x8x128xf32> to vector<8x128xf32>
    %110 = arith.addf %107, %109 : vector<8x128xf32>
    %c0_51 = arith.constant 0 : index
    %c0_52 = arith.constant 0 : index
    %111 = vector.load %arg6[%c0_51, %c0_52] : memref<8x128xf32, #tpu.memory_space<vmem>>, vector<8x128xf32>
    tpu.vector_store %arg6[%c0_51, %c0_52], %110 {strides = array<i32>} : memref<8x128xf32, #tpu.memory_space<vmem>>, vector<8x128xf32>,
    %c0_53 = arith.constant 0 : index
    %c0_54 = arith.constant 0 : index
    %c0_55 = arith.constant 0 : index
    %112 = vector.load %arg3[%c0_53, %c0_54, %c0_55] : memref<2x64x128xi32, #tpu.memory_space<vmem>>, vector<1x64x128xi32>
    %113 = vector.shape_cast %112 : vector<1x64x128xi32> to vector<64x128xi32>
    %c0_56 = arith.constant 0 : index
    %c0_57 = arith.constant 0 : index
    %c0_58 = arith.constant 0 : index
    %114 = vector.load %arg2[%c0_56, %c0_57, %c0_58] : memref<19x64x128xf32, #tpu.memory_space<vmem>>, vector<1x64x128xf32>
    %115 = vector.shape_cast %114 : vector<1x64x128xf32> to vector<64x128xf32>
    %116 = math.absf %115 : vector<64x128xf32>
    %cst_59 = arith.constant 0.000000e+00 : f32
    %117 = vector.broadcast %cst_59 : f32 to vector<64x128xf32>
    %118 = arith.subf %117, %116 : vector<64x128xf32>
    %119 = math.exp %118 : vector<64x128xf32>
    %cst_60 = arith.constant 1.000000e+00 : f32
    %120 = vector.broadcast %cst_60 : f32 to vector<64x128xf32>
    %121 = arith.addf %120, %119 : vector<64x128xf32>
    %122 = math.log %121 : vector<64x128xf32>
    %cst_61 = arith.constant 0.000000e+00 : f32
    %123 = vector.broadcast %cst_61 : f32 to vector<64x128xf32>
    %124 = arith.minimumf %115, %123 : vector<64x128xf32>
    %125 = arith.subf %124, %122 : vector<64x128xf32>
    %cst_62 = arith.constant -1.000000e+02 : f32
    %126 = vector.broadcast %cst_62 : f32 to vector<64x128xf32>
    %127 = arith.maximumf %125, %126 : vector<64x128xf32>
    %cst_63 = arith.constant 0.000000e+00 : f32
    %128 = vector.broadcast %cst_63 : f32 to vector<64x128xf32>
    %129 = arith.maximumf %115, %128 : vector<64x128xf32>
    %cst_64 = arith.constant 0.000000e+00 : f32
    %130 = vector.broadcast %cst_64 : f32 to vector<64x128xf32>
    %131 = arith.subf %130, %129 : vector<64x128xf32>
    %132 = arith.subf %131, %122 : vector<64x128xf32>
    %cst_65 = arith.constant -1.000000e+02 : f32
    %133 = vector.broadcast %cst_65 : f32 to vector<64x128xf32>
    %134 = arith.maximumf %132, %133 : vector<64x128xf32>
    %135 = math.exp %127 : vector<64x128xf32>
    %cst_66 = arith.constant 1.000000e+00 : f32
    %136 = vector.broadcast %cst_66 : f32 to vector<64x128xf32>
    %137 = arith.subf %136, %135 : vector<64x128xf32>
    %138 = arith.mulf %135, %135 : vector<64x128xf32>
    %139 = arith.mulf %137, %137 : vector<64x128xf32>
    %c0_i32_67 = arith.constant 0 : i32
    %140 = vector.broadcast %c0_i32_67 : i32 to vector<64x128xi32>
    %141 = arith.cmpi eq, %113, %140 : vector<64x128xi32>
    %cst_68 = arith.constant 2.500000e-01 : f32
    %142 = vector.broadcast %cst_68 : f32 to vector<64x128xf32>
    %143 = arith.mulf %142, %139 : vector<64x128xf32>
    %cst_69 = arith.constant 0.000000e+00 : f32
    %144 = vector.broadcast %cst_69 : f32 to vector<64x128xf32>
    %145 = arith.subf %144, %127 : vector<64x128xf32>
    %146 = arith.mulf %143, %145 : vector<64x128xf32>
    %cst_70 = arith.constant 7.500000e-01 : f32
    %147 = vector.broadcast %cst_70 : f32 to vector<64x128xf32>
    %148 = arith.mulf %147, %138 : vector<64x128xf32>
    %cst_71 = arith.constant 0.000000e+00 : f32
    %149 = vector.broadcast %cst_71 : f32 to vector<64x128xf32>
    %150 = arith.subf %149, %134 : vector<64x128xf32>
    %151 = arith.mulf %148, %150 : vector<64x128xf32>
    %152 = arith.select %141, %146, %151 : vector<64x128xi1>, vector<64x128xf32>
    %c1 = arith.constant 1 : index
    %c0_72 = arith.constant 0 : index
    %c0_73 = arith.constant 0 : index
    %153 = vector.load %arg2[%c1, %c0_72, %c0_73] : memref<19x64x128xf32, #tpu.memory_space<vmem>>, vector<1x64x128xf32>
    %154 = vector.shape_cast %153 : vector<1x64x128xf32> to vector<64x128xf32>
    %155 = math.absf %154 : vector<64x128xf32>
    %cst_74 = arith.constant 0.000000e+00 : f32
    %156 = vector.broadcast %cst_74 : f32 to vector<64x128xf32>
    %157 = arith.subf %156, %155 : vector<64x128xf32>
    %158 = math.exp %157 : vector<64x128xf32>
    %cst_75 = arith.constant 1.000000e+00 : f32
    %159 = vector.broadcast %cst_75 : f32 to vector<64x128xf32>
    %160 = arith.addf %159, %158 : vector<64x128xf32>
    %161 = math.log %160 : vector<64x128xf32>
    %cst_76 = arith.constant 0.000000e+00 : f32
    %162 = vector.broadcast %cst_76 : f32 to vector<64x128xf32>
    %163 = arith.minimumf %154, %162 : vector<64x128xf32>
    %164 = arith.subf %163, %161 : vector<64x128xf32>
    %cst_77 = arith.constant -1.000000e+02 : f32
    %165 = vector.broadcast %cst_77 : f32 to vector<64x128xf32>
    %166 = arith.maximumf %164, %165 : vector<64x128xf32>
    %cst_78 = arith.constant 0.000000e+00 : f32
    %167 = vector.broadcast %cst_78 : f32 to vector<64x128xf32>
    %168 = arith.maximumf %154, %167 : vector<64x128xf32>
    %cst_79 = arith.constant 0.000000e+00 : f32
    %169 = vector.broadcast %cst_79 : f32 to vector<64x128xf32>
    %170 = arith.subf %169, %168 : vector<64x128xf32>
    %171 = arith.subf %170, %161 : vector<64x128xf32>
    %cst_80 = arith.constant -1.000000e+02 : f32
    %172 = vector.broadcast %cst_80 : f32 to vector<64x128xf32>
    %173 = arith.maximumf %171, %172 : vector<64x128xf32>
    %174 = math.exp %166 : vector<64x128xf32>
    %cst_81 = arith.constant 1.000000e+00 : f32
    %175 = vector.broadcast %cst_81 : f32 to vector<64x128xf32>
    %176 = arith.subf %175, %174 : vector<64x128xf32>
    %177 = arith.mulf %174, %174 : vector<64x128xf32>
    %178 = arith.mulf %176, %176 : vector<64x128xf32>
    %c1_i32 = arith.constant 1 : i32
    %179 = vector.broadcast %c1_i32 : i32 to vector<64x128xi32>
    %180 = arith.cmpi eq, %113, %179 : vector<64x128xi32>
    %cst_82 = arith.constant 2.500000e-01 : f32
    %181 = vector.broadcast %cst_82 : f32 to vector<64x128xf32>
    %182 = arith.mulf %181, %178 : vector<64x128xf32>
    %cst_83 = arith.constant 0.000000e+00 : f32
    %183 = vector.broadcast %cst_83 : f32 to vector<64x128xf32>
    %184 = arith.subf %183, %166 : vector<64x128xf32>
    %185 = arith.mulf %182, %184 : vector<64x128xf32>
    %cst_84 = arith.constant 7.500000e-01 : f32
    %186 = vector.broadcast %cst_84 : f32 to vector<64x128xf32>
    %187 = arith.mulf %186, %177 : vector<64x128xf32>
    %cst_85 = arith.constant 0.000000e+00 : f32
    %188 = vector.broadcast %cst_85 : f32 to vector<64x128xf32>
    %189 = arith.subf %188, %173 : vector<64x128xf32>
    %190 = arith.mulf %187, %189 : vector<64x128xf32>
    %191 = arith.select %180, %185, %190 : vector<64x128xi1>, vector<64x128xf32>
    %192 = arith.addf %152, %191 : vector<64x128xf32>
    %c2 = arith.constant 2 : index
    %c0_86 = arith.constant 0 : index
    %c0_87 = arith.constant 0 : index
    %193 = vector.load %arg2[%c2, %c0_86, %c0_87] : memref<19x64x128xf32, #tpu.memory_space<vmem>>, vector<1x64x128xf32>
    %194 = vector.shape_cast %193 : vector<1x64x128xf32> to vector<64x128xf32>
    %195 = math.absf %194 : vector<64x128xf32>
    %cst_88 = arith.constant 0.000000e+00 : f32
    %196 = vector.broadcast %cst_88 : f32 to vector<64x128xf32>
    %197 = arith.subf %196, %195 : vector<64x128xf32>
    %198 = math.exp %197 : vector<64x128xf32>
    %cst_89 = arith.constant 1.000000e+00 : f32
    %199 = vector.broadcast %cst_89 : f32 to vector<64x128xf32>
    %200 = arith.addf %199, %198 : vector<64x128xf32>
    %201 = math.log %200 : vector<64x128xf32>
    %cst_90 = arith.constant 0.000000e+00 : f32
    %202 = vector.broadcast %cst_90 : f32 to vector<64x128xf32>
    %203 = arith.minimumf %194, %202 : vector<64x128xf32>
    %204 = arith.subf %203, %201 : vector<64x128xf32>
    %cst_91 = arith.constant -1.000000e+02 : f32
    %205 = vector.broadcast %cst_91 : f32 to vector<64x128xf32>
    %206 = arith.maximumf %204, %205 : vector<64x128xf32>
    %cst_92 = arith.constant 0.000000e+00 : f32
    %207 = vector.broadcast %cst_92 : f32 to vector<64x128xf32>
    %208 = arith.maximumf %194, %207 : vector<64x128xf32>
    %cst_93 = arith.constant 0.000000e+00 : f32
    %209 = vector.broadcast %cst_93 : f32 to vector<64x128xf32>
    %210 = arith.subf %209, %208 : vector<64x128xf32>
    %211 = arith.subf %210, %201 : vector<64x128xf32>
    %cst_94 = arith.constant -1.000000e+02 : f32
    %212 = vector.broadcast %cst_94 : f32 to vector<64x128xf32>
    %213 = arith.maximumf %211, %212 : vector<64x128xf32>
    %214 = math.exp %206 : vector<64x128xf32>
    %cst_95 = arith.constant 1.000000e+00 : f32
    %215 = vector.broadcast %cst_95 : f32 to vector<64x128xf32>
    %216 = arith.subf %215, %214 : vector<64x128xf32>
    %217 = arith.mulf %214, %214 : vector<64x128xf32>
    %218 = arith.mulf %216, %216 : vector<64x128xf32>
    %c2_i32 = arith.constant 2 : i32
    %219 = vector.broadcast %c2_i32 : i32 to vector<64x128xi32>
    %220 = arith.cmpi eq, %113, %219 : vector<64x128xi32>
    %cst_96 = arith.constant 2.500000e-01 : f32
    %221 = vector.broadcast %cst_96 : f32 to vector<64x128xf32>
    %222 = arith.mulf %221, %218 : vector<64x128xf32>
    %cst_97 = arith.constant 0.000000e+00 : f32
    %223 = vector.broadcast %cst_97 : f32 to vector<64x128xf32>
    %224 = arith.subf %223, %206 : vector<64x128xf32>
    %225 = arith.mulf %222, %224 : vector<64x128xf32>
    %cst_98 = arith.constant 7.500000e-01 : f32
    %226 = vector.broadcast %cst_98 : f32 to vector<64x128xf32>
    %227 = arith.mulf %226, %217 : vector<64x128xf32>
    %cst_99 = arith.constant 0.000000e+00 : f32
    %228 = vector.broadcast %cst_99 : f32 to vector<64x128xf32>
    %229 = arith.subf %228, %213 : vector<64x128xf32>
    %230 = arith.mulf %227, %229 : vector<64x128xf32>
    %231 = arith.select %220, %225, %230 : vector<64x128xi1>, vector<64x128xf32>
    %232 = arith.addf %192, %231 : vector<64x128xf32>
    %c0_100 = arith.constant 0 : index
    %c0_101 = arith.constant 0 : index
    %233 = vector.load %arg5[%c0_100, %c0_101] : memref<8x128xf32, #tpu.memory_space<vmem>>, vector<8x128xf32>
    %234 = vector.shape_cast %232 : vector<64x128xf32> to vector<8x8x128xf32>
    %cst_102 = arith.constant dense<0.000000e+00> : vector<8x128xf32>
    %235 = vector.multi_reduction <add>, %234, %cst_102 [0] : vector<8x8x128xf32> to vector<8x128xf32>
    %236 = arith.addf %233, %235 : vector<8x128xf32>
    %c0_103 = arith.constant 0 : index
    %c0_104 = arith.constant 0 : index
    %237 = vector.load %arg5[%c0_103, %c0_104] : memref<8x128xf32, #tpu.memory_space<vmem>>, vector<8x128xf32>
    tpu.vector_store %arg5[%c0_103, %c0_104], %236 {strides = array<i32>} : memref<8x128xf32, #tpu.memory_space<vmem>>, vector<8x128xf32>,
    %c1_105 = arith.constant 1 : index
    %c0_106 = arith.constant 0 : index
    %c0_107 = arith.constant 0 : index
    %238 = vector.load %arg3[%c1_105, %c0_106, %c0_107] : memref<2x64x128xi32, #tpu.memory_space<vmem>>, vector<1x64x128xi32>
    %239 = vector.shape_cast %238 : vector<1x64x128xi32> to vector<64x128xi32>
    %c10 = arith.constant 10 : index
    %c0_108 = arith.constant 0 : index
    %c0_109 = arith.constant 0 : index
    %240 = vector.load %arg2[%c10, %c0_108, %c0_109] : memref<19x64x128xf32, #tpu.memory_space<vmem>>, vector<1x64x128xf32>
    %241 = vector.shape_cast %240 : vector<1x64x128xf32> to vector<64x128xf32>
    %c11 = arith.constant 11 : index
    %c0_110 = arith.constant 0 : index
    %c0_111 = arith.constant 0 : index
    %242 = vector.load %arg2[%c11, %c0_110, %c0_111] : memref<19x64x128xf32, #tpu.memory_space<vmem>>, vector<1x64x128xf32>
    %243 = vector.shape_cast %242 : vector<1x64x128xf32> to vector<64x128xf32>
    %c0_i32_112 = arith.constant 0 : i32
    %244 = vector.broadcast %c0_i32_112 : i32 to vector<64x128xi32>
    %245 = arith.cmpi eq, %239, %244 : vector<64x128xi32>
    %246 = arith.select %245, %241, %243 : vector<64x128xi1>, vector<64x128xf32>
    %247 = arith.addf %241, %243 : vector<64x128xf32>
    %248 = arith.subf %247, %246 : vector<64x128xf32>
    %249 = arith.subf %248, %246 : vector<64x128xf32>
    %cst_113 = arith.constant 0.000000e+00 : f32
    %250 = vector.broadcast %cst_113 : f32 to vector<64x128xf32>
    %251 = arith.maximumf %249, %250 : vector<64x128xf32>
    %252 = math.absf %249 : vector<64x128xf32>
    %cst_114 = arith.constant 0.000000e+00 : f32
    %253 = vector.broadcast %cst_114 : f32 to vector<64x128xf32>
    %254 = arith.subf %253, %252 : vector<64x128xf32>
    %255 = math.exp %254 : vector<64x128xf32>
    %cst_115 = arith.constant 1.000000e+00 : f32
    %256 = vector.broadcast %cst_115 : f32 to vector<64x128xf32>
    %257 = arith.addf %256, %255 : vector<64x128xf32>
    %258 = math.log %257 : vector<64x128xf32>
    %259 = arith.addf %251, %258 : vector<64x128xf32>
    %c0_116 = arith.constant 0 : index
    %c0_117 = arith.constant 0 : index
    %260 = vector.load %arg7[%c0_116, %c0_117] : memref<8x128xf32, #tpu.memory_space<vmem>>, vector<8x128xf32>
    %261 = vector.shape_cast %259 : vector<64x128xf32> to vector<8x8x128xf32>
    %cst_118 = arith.constant dense<0.000000e+00> : vector<8x128xf32>
    %262 = vector.multi_reduction <add>, %261, %cst_118 [0] : vector<8x8x128xf32> to vector<8x128xf32>
    %263 = arith.addf %260, %262 : vector<8x128xf32>
    %c0_119 = arith.constant 0 : index
    %c0_120 = arith.constant 0 : index
    %264 = vector.load %arg7[%c0_119, %c0_120] : memref<8x128xf32, #tpu.memory_space<vmem>>, vector<8x128xf32>
    tpu.vector_store %arg7[%c0_119, %c0_120], %263 {strides = array<i32>} : memref<8x128xf32, #tpu.memory_space<vmem>>, vector<8x128xf32>,
    %c0_i32_121 = arith.constant 0 : i32
    %265 = arith.cmpi eq, %arg1, %c0_i32_121 : i32
    %266 = arith.extui %265 : i1 to i32
    %c0_i32_122 = arith.constant 0 : i32
    %267 = arith.cmpi ne, %266, %c0_i32_122 : i32
    scf.if %267 {
      %c0_123 = arith.constant 0 : index
      %c0_124 = arith.constant 0 : index
      %268 = vector.load %arg5[%c0_123, %c0_124] : memref<8x128xf32, #tpu.memory_space<vmem>>, vector<8x128xf32>
      %269 = vector.shape_cast %268 : vector<8x128xf32> to vector<1x8x128xf32>
      %cst_125 = arith.constant dense<0.000000e+00> : vector<1xf32>
      %270 = vector.multi_reduction <add>, %269, %cst_125 [1, 2] : vector<1x8x128xf32> to vector<1xf32>
      %271 = vector.shape_cast %270 : vector<1xf32> to vector<1x1x1xf32>
      %272 = vector.extract %271[0, 0, 0] : f32 from vector<1x1x1xf32>
      %c0_126 = arith.constant 0 : index
      %c0_127 = arith.constant 0 : index
      %273 = vector.load %arg6[%c0_126, %c0_127] : memref<8x128xf32, #tpu.memory_space<vmem>>, vector<8x128xf32>
      %274 = vector.shape_cast %273 : vector<8x128xf32> to vector<1x8x128xf32>
      %cst_128 = arith.constant dense<0.000000e+00> : vector<1xf32>
      %275 = vector.multi_reduction <add>, %274, %cst_128 [1, 2] : vector<1x8x128xf32> to vector<1xf32>
      %276 = vector.shape_cast %275 : vector<1xf32> to vector<1x1x1xf32>
      %277 = vector.extract %276[0, 0, 0] : f32 from vector<1x1x1xf32>
      %c0_129 = arith.constant 0 : index
      %c0_130 = arith.constant 0 : index
      %278 = vector.load %arg7[%c0_129, %c0_130] : memref<8x128xf32, #tpu.memory_space<vmem>>, vector<8x128xf32>
      %279 = vector.shape_cast %278 : vector<8x128xf32> to vector<1x8x128xf32>
      %cst_131 = arith.constant dense<0.000000e+00> : vector<1xf32>
      %280 = vector.multi_reduction <add>, %279, %cst_131 [1, 2] : vector<1x8x128xf32> to vector<1xf32>
      %281 = vector.shape_cast %280 : vector<1xf32> to vector<1x1x1xf32>
      %282 = vector.extract %281[0, 0, 0] : f32 from vector<1x1x1xf32>
      %283 = tpu.iota {dimensions = array<i32: 2>} : vector<1x8x128xi32>
      %c0_i32_132 = arith.constant 0 : i32
      %284 = vector.broadcast %c0_i32_132 : i32 to vector<1x8x128xi32>
      %285 = arith.cmpi eq, %283, %284 : vector<1x8x128xi32>
      %c1_i32_133 = arith.constant 1 : i32
      %286 = vector.broadcast %c1_i32_133 : i32 to vector<1x8x128xi32>
      %287 = arith.cmpi eq, %283, %286 : vector<1x8x128xi32>
      %c2_i32_134 = arith.constant 2 : i32
      %288 = vector.broadcast %c2_i32_134 : i32 to vector<1x8x128xi32>
      %289 = arith.cmpi eq, %283, %288 : vector<1x8x128xi32>
      %cst_135 = arith.constant 0.000000e+00 : f32
      %290 = vector.broadcast %282 : f32 to vector<1x8x128xf32>
      %291 = vector.broadcast %cst_135 : f32 to vector<1x8x128xf32>
      %292 = arith.select %289, %290, %291 : vector<1x8x128xi1>, vector<1x8x128xf32>
      %293 = vector.broadcast %277 : f32 to vector<1x8x128xf32>
      %294 = arith.select %287, %293, %292 : vector<1x8x128xi1>, vector<1x8x128xf32>
      %295 = vector.broadcast %272 : f32 to vector<1x8x128xf32>
      %296 = arith.select %285, %295, %294 : vector<1x8x128xi1>, vector<1x8x128xf32>
      %c0_136 = arith.constant 0 : index
      %c0_137 = arith.constant 0 : index
      %c0_138 = arith.constant 0 : index
      %297 = vector.load %arg4[%c0_136, %c0_137, %c0_138] : memref<1x8x128xf32, #tpu.memory_space<vmem>>, vector<1x8x128xf32>
      tpu.vector_store %arg4[%c0_136, %c0_137, %c0_138], %296 {strides = array<i32>} : memref<1x8x128xf32, #tpu.memory_space<vmem>>, vector<1x8x128xf32>,
    } else {
    }
    return
  }
  func.func @transform_0(%arg0: i32, %arg1: i32) -> (i32, i32, i32) {
    %c1_i32 = arith.constant 1 : i32
    %0 = arith.muli %arg0, %c1_i32 : i32
    %1 = arith.addi %0, %arg1 : i32
    %c0_i32 = arith.constant 0 : i32
    %c0_i32_0 = arith.constant 0 : i32
    %c0_i32_1 = arith.constant 0 : i32
    return %c0_i32, %1, %c0_i32_0 : i32, i32, i32
  }
  func.func @transform_1(%arg0: i32, %arg1: i32) -> (i32, i32, i32) {
    %c1_i32 = arith.constant 1 : i32
    %0 = arith.muli %arg0, %c1_i32 : i32
    %1 = arith.addi %0, %arg1 : i32
    %c0_i32 = arith.constant 0 : i32
    %c0_i32_0 = arith.constant 0 : i32
    %c0_i32_1 = arith.constant 0 : i32
    return %c0_i32, %1, %c0_i32_0 : i32, i32, i32
  }
  func.func @transform_2(%arg0: i32, %arg1: i32) -> (i32, i32, i32) {
    %c0_i32 = arith.constant 0 : i32
    %c0_i32_0 = arith.constant 0 : i32
    %c0_i32_1 = arith.constant 0 : i32
    return %arg0, %c0_i32, %c0_i32_0 : i32, i32, i32
  }
}

</mosaic_0001>

<llo_original>
// kernel: pointpillars_losses.1
$region0: #{pointpillars_losses.1}
  #allocation0 [shape = 'u32[]', space=smem, size = 0x4, offset = 0x4, fixed_abs, tag = 'smem constant byte address 0x4 - core index']
  #allocation1 [shape = 'u32[144,128]{1,0:T(1,128)}', space=vmem, size = 0x12000, scoped, tag = 'internal scratch']
  #allocation2 [shape = 'f32[8,128]{1,0:T(8,128)}', space=vmem, size = 0x1000, scoped, tag = 'scratch operand']
  #allocation3 [shape = 'f32[8,128]{1,0:T(8,128)}', space=vmem, size = 0x1000, scoped, tag = 'scratch operand']
  #allocation4 [shape = 'f32[8,128]{1,0:T(8,128)}', space=vmem, size = 0x1000, scoped, tag = 'scratch operand']
  %s0 = inlined_call_operand.vmem [shape: f32[19,64,128], index: 0, kind: input, shape index: {}]
  %s1 = inlined_call_operand.vmem [shape: s32[2,64,128], index: 1, kind: input, shape index: {}]
  %s2 = inlined_call_operand.vmem [shape: f32[1,8,128], index: 2, kind: output, shape index: {}]
  %s3 = sld [smem:[#allocation0]]
  $region26: #{pointpillars_losses.1} parent=0
    _
  %s5 = ssub.s32 1, %s3
  %s6 = scalar_select 0, %s5, %s3
  // Predicated region
  $region2: #{pointpillars_losses.1} parent=0 // pred_check
    _
  $region3: #{pointpillars_losses.1} parent=0 // pred_check_branch
    %8 = sbr.rel (0) target = $region5
  $region4: #{pointpillars_losses.1} parent=0 // pred_region
    %s9 = sadd.s32 0, 0
    %s10 = smul.u32 8, %s9
    %p11 = scmp.lt.s32.totalorder %s10, 7
    %s12 = scalar_select %p11, %s10, 7
    %s13 = smul.addr %s12, 8
    %s14 = scalar_lea.vmem %s0, %s13
    %s15 = sadd.s32 0, 0
    %s16 = smul.u32 8, %s15
  $region5: #{pointpillars_losses.1} parent=0 // pred_fallthru
    _
  // Predicated region
  $region6: #{pointpillars_losses.1} parent=0 // pred_check
    _
  $region7: #{pointpillars_losses.1} parent=0 // pred_check_branch
    %18 = sbr.rel (0) target = $region9
  $region8: #{pointpillars_losses.1} parent=0 // pred_region
    %s19 = sadd.s32 0, 0
    %s20 = smul.u32 8, %s19
    %p21 = scmp.lt.s32.totalorder %s20, 7
    %s22 = scalar_select %p21, %s20, 7
    %s23 = smul.addr %s22, 8
    %s24 = scalar_lea.vmem %s1, %s23
    %s25 = sadd.s32 0, 0
    %s26 = smul.u32 8, %s25
  $region9: #{pointpillars_losses.1} parent=0 // pred_fallthru
    _
  %s27 = sadd.s32 0, 0
  %s28 = smul.u32 8, %s27
  %p29 = scmp.lt.s32.totalorder %s28, 7
  %s30 = scalar_select %p29, %s28, 7
  %s31 = smul.addr %s30, 8
  %s32 = scalar_lea.vmem %s0, %s31
  %s33 = sadd.s32 0, 0
  %s34 = smul.u32 8, %s33
  %p35 = scmp.lt.s32.totalorder %s34, 7
  %s36 = scalar_select %p35, %s34, 7
  %s37 = smul.addr %s36, 8
  %s38 = scalar_lea.vmem %s1, %s37
  %s39 = sadd.s32 0, 0
  %s40 = smul.u32 8, %s39
  %p41 = scmp.lt.s32.totalorder %s40, 7
  %s42 = scalar_select %p41, %s40, 7
  %s43 = smul.addr %s42, 8
  %s44 = scalar_lea.vmem %s0, %s43
  %s45 = sadd.s32 0, 0
  %s46 = smul.u32 8, %s45
  %s47 = sadd.s32 0, 0
  %s48 = smul.u32 8, %s47
  %p49 = scmp.lt.s32.totalorder %s48, 7
  %s50 = scalar_select %p49, %s48, 7
  %s51 = smul.addr %s50, 8
  %s52 = scalar_lea.vmem %s1, %s51
  %s53 = sadd.s32 0, 0
  %s54 = smul.u32 8, %s53
  %p55 = scmp.eq.s32.totalorder 0, 0
  // Predicated region
  $region10: #{pointpillars_losses.1} parent=0 // pred_check
    %p56 = pneg %p55
  $region11: #{pointpillars_losses.1} parent=0 // pred_check_branch
    %58 = sbr.rel (%p56) target = $region13
  $region12: #{pointpillars_losses.1} parent=0 // pred_region
    %59 = vst [vmem:[#allocation2] sm:$0xff] 0.0
    %60 = vst [vmem:[#allocation3] sm:$0xff] 0.0
    %61 = vst [vmem:[#allocation4] sm:$0xff] 0.0
  $region13: #{pointpillars_losses.1} parent=0 // pred_fallthru
    _
  %s62 = scalar_lea.vmem %s44, 192
  %v63 = vld [vmem:[%s62] sm:$0xff]
  %v64 = vld [vmem:[%s62 + $0x8] sm:$0xff]
  %v65 = vld [vmem:[%s62 + $0x10] sm:$0xff]
  %v66 = vld [vmem:[%s62 + $0x18] sm:$0xff]
  %v67 = vld [vmem:[%s62 + $0x20] sm:$0xff]
  %v68 = vld [vmem:[%s62 + $0x28] sm:$0xff]
  %v69 = vld [vmem:[%s62 + $0x30] sm:$0xff]
  %v70 = vld [vmem:[%s62 + $0x38] sm:$0xff]
  %s71 = scalar_lea.vmem %s44, 768
  %v72 = vld [vmem:[%s71] sm:$0xff]
  %v73 = vld [vmem:[%s71 + $0x8] sm:$0xff]
  %v74 = vld [vmem:[%s71 + $0x10] sm:$0xff]
  %v75 = vld [vmem:[%s71 + $0x18] sm:$0xff]
  %v76 = vld [vmem:[%s71 + $0x20] sm:$0xff]
  %v77 = vld [vmem:[%s71 + $0x28] sm:$0xff]
  %v78 = vld [vmem:[%s71 + $0x30] sm:$0xff]
  %v79 = vld [vmem:[%s71 + $0x38] sm:$0xff]
  %v80 = vsub.f32 %v63, %v72
  %v81 = vsub.f32 %v64, %v73
  %v82 = vsub.f32 %v65, %v74
  %v83 = vsub.f32 %v66, %v75
  %v84 = vsub.f32 %v67, %v76
  %v85 = vsub.f32 %v68, %v77
  %v86 = vsub.f32 %v69, %v78
  %v87 = vsub.f32 %v70, %v79
  %v88 = vand.u32 2147483647, %v80
  %v89 = vand.u32 2147483647, %v81
  %v90 = vand.u32 2147483647, %v82
  %v91 = vand.u32 2147483647, %v83
  %v92 = vand.u32 2147483647, %v84
  %v93 = vand.u32 2147483647, %v85
  %v94 = vand.u32 2147483647, %v86
  %v95 = vand.u32 2147483647, %v87
  %v96 = vmul.f32 %v80, 4.5
  %v97 = vmul.f32 %v81, 4.5
  %v98 = vmul.f32 %v82, 4.5
  %v99 = vmul.f32 %v83, 4.5
  %v100 = vmul.f32 %v84, 4.5
  %v101 = vmul.f32 %v85, 4.5
  %v102 = vmul.f32 %v86, 4.5
  %v103 = vmul.f32 %v87, 4.5
  %v104 = vmul.f32 %v96, %v80
  %v105 = vmul.f32 %v97, %v81
  %v106 = vmul.f32 %v98, %v82
  %v107 = vmul.f32 %v99, %v83
  %v108 = vmul.f32 %v100, %v84
  %v109 = vmul.f32 %v101, %v85
  %v110 = vmul.f32 %v102, %v86
  %v111 = vmul.f32 %v103, %v87
  %v112 = vsub.f32 %v88, 0.055555556
  %v113 = vsub.f32 %v89, 0.055555556
  %v114 = vsub.f32 %v90, 0.055555556
  %v115 = vsub.f32 %v91, 0.055555556
  %v116 = vsub.f32 %v92, 0.055555556
  %v117 = vsub.f32 %v93, 0.055555556
  %v118 = vsub.f32 %v94, 0.055555556
  %v119 = vsub.f32 %v95, 0.055555556
  %vm120 = vcmp.lt.f32.partialorder %v88, 0.11111111
  %vm121 = vcmp.lt.f32.partialorder %v89, 0.11111111
  %vm122 = vcmp.lt.f32.partialorder %v90, 0.11111111
  %vm123 = vcmp.lt.f32.partialorder %v91, 0.11111111
  %vm124 = vcmp.lt.f32.partialorder %v92, 0.11111111
  %vm125 = vcmp.lt.f32.partialorder %v93, 0.11111111
  %vm126 = vcmp.lt.f32.partialorder %v94, 0.11111111
  %vm127 = vcmp.lt.f32.partialorder %v95, 0.11111111
  %v128 = vsel %vm120, %v104, %v112
  %v129 = vsel %vm121, %v105, %v113
  %v130 = vsel %vm122, %v106, %v114
  %v131 = vsel %vm123, %v107, %v115
  %v132 = vsel %vm124, %v108, %v116
  %v133 = vsel %vm125, %v109, %v117
  %v134 = vsel %vm126, %v110, %v118
  %v135 = vsel %vm127, %v111, %v119
  %s136 = scalar_lea.vmem %s44, 256
  %v137 = vld [vmem:[%s136] sm:$0xff]
  %v138 = vld [vmem:[%s136 + $0x8] sm:$0xff]
  %v139 = vld [vmem:[%s136 + $0x10] sm:$0xff]
  %v140 = vld [vmem:[%s136 + $0x18] sm:$0xff]
  %v141 = vld [vmem:[%s136 + $0x20] sm:$0xff]
  %v142 = vld [vmem:[%s136 + $0x28] sm:$0xff]
  %v143 = vld [vmem:[%s136 + $0x30] sm:$0xff]
  %v144 = vld [vmem:[%s136 + $0x38] sm:$0xff]
  %s145 = scalar_lea.vmem %s44, 832
  %v146 = vld [vmem:[%s145] sm:$0xff]
  %v147 = vld [vmem:[%s145 + $0x8] sm:$0xff]
  %v148 = vld [vmem:[%s145 + $0x10] sm:$0xff]
  %v149 = vld [vmem:[%s145 + $0x18] sm:$0xff]
  %v150 = vld [vmem:[%s145 + $0x20] sm:$0xff]
  %v151 = vld [vmem:[%s145 + $0x28] sm:$0xff]
  %v152 = vld [vmem:[%s145 + $0x30] sm:$0xff]
  %v153 = vld [vmem:[%s145 + $0x38] sm:$0xff]
  %v154 = vsub.f32 %v137, %v146
  %v155 = vsub.f32 %v138, %v147
  %v156 = vsub.f32 %v139, %v148
  %v157 = vsub.f32 %v140, %v149
  %v158 = vsub.f32 %v141, %v150
  %v159 = vsub.f32 %v142, %v151
  %v160 = vsub.f32 %v143, %v152
  %v161 = vsub.f32 %v144, %v153
  %v162 = vand.u32 2147483647, %v154
  %v163 = vand.u32 2147483647, %v155
  %v164 = vand.u32 2147483647, %v156
  %v165 = vand.u32 2147483647, %v157
  %v166 = vand.u32 2147483647, %v158
  %v167 = vand.u32 2147483647, %v159
  %v168 = vand.u32 2147483647, %v160
  %v169 = vand.u32 2147483647, %v161
  %v170 = vmul.f32 %v154, 4.5
  %v171 = vmul.f32 %v155, 4.5
  %v172 = vmul.f32 %v156, 4.5
  %v173 = vmul.f32 %v157, 4.5
  %v174 = vmul.f32 %v158, 4.5
  %v175 = vmul.f32 %v159, 4.5
  %v176 = vmul.f32 %v160, 4.5
  %v177 = vmul.f32 %v161, 4.5
  %v178 = vmul.f32 %v170, %v154
  %v179 = vmul.f32 %v171, %v155
  %v180 = vmul.f32 %v172, %v156
  %v181 = vmul.f32 %v173, %v157
  %v182 = vmul.f32 %v174, %v158
  %v183 = vmul.f32 %v175, %v159
  %v184 = vmul.f32 %v176, %v160
  %v185 = vmul.f32 %v177, %v161
  %v186 = vsub.f32 %v162, 0.055555556
  %v187 = vsub.f32 %v163, 0.055555556
  %v188 = vsub.f32 %v164, 0.055555556
  %v189 = vsub.f32 %v165, 0.055555556
  %v190 = vsub.f32 %v166, 0.055555556
  %v191 = vsub.f32 %v167, 0.055555556
  %v192 = vsub.f32 %v168, 0.055555556
  %v193 = vsub.f32 %v169, 0.055555556
  %vm194 = vcmp.lt.f32.partialorder %v162, 0.11111111
  %vm195 = vcmp.lt.f32.partialorder %v163, 0.11111111
  %vm196 = vcmp.lt.f32.partialorder %v164, 0.11111111
  %vm197 = vcmp.lt.f32.partialorder %v165, 0.11111111
  %vm198 = vcmp.lt.f32.partialorder %v166, 0.11111111
  %vm199 = vcmp.lt.f32.partialorder %v167, 0.11111111
  %vm200 = vcmp.lt.f32.partialorder %v168, 0.11111111
  %vm201 = vcmp.lt.f32.partialorder %v169, 0.11111111
  %v202 = vsel %vm194, %v178, %v186
  %v203 = vsel %vm195, %v179, %v187
  %v204 = vsel %vm196, %v180, %v188
  %v205 = vsel %vm197, %v181, %v189
  %v206 = vsel %vm198, %v182, %v190
  %v207 = vsel %vm199, %v183, %v191
  %v208 = vsel %vm200, %v184, %v192
  %v209 = vsel %vm201, %v185, %v193
  %v210 = vadd.f32 %v128, %v202
  %v211 = vadd.f32 %v129, %v203
  %v212 = vadd.f32 %v130, %v204
  %v213 = vadd.f32 %v131, %v205
  %v214 = vadd.f32 %v132, %v206
  %v215 = vadd.f32 %v133, %v207
  %v216 = vadd.f32 %v134, %v208
  %v217 = vadd.f32 %v135, %v209
  %s218 = scalar_lea.vmem %s44, 320
  %v219 = vld [vmem:[%s218] sm:$0xff]
  %v220 = vld [vmem:[%s218 + $0x8] sm:$0xff]
  %v221 = vld [vmem:[%s218 + $0x10] sm:$0xff]
  %v222 = vld [vmem:[%s218 + $0x18] sm:$0xff]
  %v223 = vld [vmem:[%s218 + $0x20] sm:$0xff]
  %v224 = vld [vmem:[%s218 + $0x28] sm:$0xff]
  %v225 = vld [vmem:[%s218 + $0x30] sm:$0xff]
  %v226 = vld [vmem:[%s218 + $0x38] sm:$0xff]
  %s227 = scalar_lea.vmem %s44, 896
  %v228 = vld [vmem:[%s227] sm:$0xff]
  %v229 = vld [vmem:[%s227 + $0x8] sm:$0xff]
  %v230 = vld [vmem:[%s227 + $0x10] sm:$0xff]
  %v231 = vld [vmem:[%s227 + $0x18] sm:$0xff]
  %v232 = vld [vmem:[%s227 + $0x20] sm:$0xff]
  %v233 = vld [vmem:[%s227 + $0x28] sm:$0xff]
  %v234 = vld [vmem:[%s227 + $0x30] sm:$0xff]
  %v235 = vld [vmem:[%s227 + $0x38] sm:$0xff]
  %v236 = vsub.f32 %v219, %v228
  %v237 = vsub.f32 %v220, %v229
  %v238 = vsub.f32 %v221, %v230
  %v239 = vsub.f32 %v222, %v231
  %v240 = vsub.f32 %v223, %v232
  %v241 = vsub.f32 %v224, %v233
  %v242 = vsub.f32 %v225, %v234
  %v243 = vsub.f32 %v226, %v235
  %v244 = vand.u32 2147483647, %v236
  %v245 = vand.u32 2147483647, %v237
  %v246 = vand.u32 2147483647, %v238
  %v247 = vand.u32 2147483647, %v239
  %v248 = vand.u32 2147483647, %v240
  %v249 = vand.u32 2147483647, %v241
  %v250 = vand.u32 2147483647, %v242
  %v251 = vand.u32 2147483647, %v243
  %v252 = vmul.f32 %v236, 4.5
  %v253 = vmul.f32 %v237, 4.5
  %v254 = vmul.f32 %v238, 4.5
  %v255 = vmul.f32 %v239, 4.5
  %v256 = vmul.f32 %v240, 4.5
  %v257 = vmul.f32 %v241, 4.5
  %v258 = vmul.f32 %v242, 4.5
  %v259 = vmul.f32 %v243, 4.5
  %v260 = vmul.f32 %v252, %v236
  %v261 = vmul.f32 %v253, %v237
  %v262 = vmul.f32 %v254, %v238
  %v263 = vmul.f32 %v255, %v239
  %v264 = vmul.f32 %v256, %v240
  %v265 = vmul.f32 %v257, %v241
  %v266 = vmul.f32 %v258, %v242
  %v267 = vmul.f32 %v259, %v243
  %v268 = vsub.f32 %v244, 0.055555556
  %v269 = vsub.f32 %v245, 0.055555556
  %v270 = vsub.f32 %v246, 0.055555556
  %v271 = vsub.f32 %v247, 0.055555556
  %v272 = vsub.f32 %v248, 0.055555556
  %v273 = vsub.f32 %v249, 0.055555556
  %v274 = vsub.f32 %v250, 0.055555556
  %v275 = vsub.f32 %v251, 0.055555556
  %vm276 = vcmp.lt.f32.partialorder %v244, 0.11111111
  %vm277 = vcmp.lt.f32.partialorder %v245, 0.11111111
  %vm278 = vcmp.lt.f32.partialorder %v246, 0.11111111
  %vm279 = vcmp.lt.f32.partialorder %v247, 0.11111111
  %vm280 = vcmp.lt.f32.partialorder %v248, 0.11111111
  %vm281 = vcmp.lt.f32.partialorder %v249, 0.11111111
  %vm282 = vcmp.lt.f32.partialorder %v250, 0.11111111
  %vm283 = vcmp.lt.f32.partialorder %v251, 0.11111111
  %v284 = vsel %vm276, %v260, %v268
  %v285 = vsel %vm277, %v261, %v269
  %v286 = vsel %vm278, %v262, %v270
  %v287 = vsel %vm279, %v263, %v271
  %v288 = vsel %vm280, %v264, %v272
  %v289 = vsel %vm281, %v265, %v273
  %v290 = vsel %vm282, %v266, %v274
  %v291 = vsel %vm283, %v267, %v275
  %v292 = vadd.f32 %v210, %v284
  %v293 = vadd.f32 %v211, %v285
  %v294 = vadd.f32 %v212, %v286
  %v295 = vadd.f32 %v213, %v287
  %v296 = vadd.f32 %v214, %v288
  %v297 = vadd.f32 %v215, %v289
  %v298 = vadd.f32 %v216, %v290
  %v299 = vadd.f32 %v217, %v291
  %s300 = scalar_lea.vmem %s44, 384
  %v301 = vld [vmem:[%s300] sm:$0xff]
  %v302 = vld [vmem:[%s300 + $0x8] sm:$0xff]
  %v303 = vld [vmem:[%s300 + $0x10] sm:$0xff]
  %v304 = vld [vmem:[%s300 + $0x18] sm:$0xff]
  %v305 = vld [vmem:[%s300 + $0x20] sm:$0xff]
  %v306 = vld [vmem:[%s300 + $0x28] sm:$0xff]
  %v307 = vld [vmem:[%s300 + $0x30] sm:$0xff]
  %v308 = vld [vmem:[%s300 + $0x38] sm:$0xff]
  %s309 = scalar_lea.vmem %s44, 960
  %v310 = vld [vmem:[%s309] sm:$0xff]
  %v311 = vld [vmem:[%s309 + $0x8] sm:$0xff]
  %v312 = vld [vmem:[%s309 + $0x10] sm:$0xff]
  %v313 = vld [vmem:[%s309 + $0x18] sm:$0xff]
  %v314 = vld [vmem:[%s309 + $0x20] sm:$0xff]
  %v315 = vld [vmem:[%s309 + $0x28] sm:$0xff]
  %v316 = vld [vmem:[%s309 + $0x30] sm:$0xff]
  %v317 = vld [vmem:[%s309 + $0x38] sm:$0xff]
  %v318 = vsub.f32 %v301, %v310
  %v319 = vsub.f32 %v302, %v311
  %v320 = vsub.f32 %v303, %v312
  %v321 = vsub.f32 %v304, %v313
  %v322 = vsub.f32 %v305, %v314
  %v323 = vsub.f32 %v306, %v315
  %v324 = vsub.f32 %v307, %v316
  %v325 = vsub.f32 %v308, %v317
  %v326 = vand.u32 2147483647, %v318
  %v327 = vand.u32 2147483647, %v319
  %v328 = vand.u32 2147483647, %v320
  %v329 = vand.u32 2147483647, %v321
  %v330 = vand.u32 2147483647, %v322
  %v331 = vand.u32 2147483647, %v323
  %v332 = vand.u32 2147483647, %v324
  %v333 = vand.u32 2147483647, %v325
  %v334 = vmul.f32 %v318, 4.5
  %v335 = vmul.f32 %v319, 4.5
  %v336 = vmul.f32 %v320, 4.5
  %v337 = vmul.f32 %v321, 4.5
  %v338 = vmul.f32 %v322, 4.5
  %v339 = vmul.f32 %v323, 4.5
  %v340 = vmul.f32 %v324, 4.5
  %v341 = vmul.f32 %v325, 4.5
  %v342 = vmul.f32 %v334, %v318
  %v343 = vmul.f32 %v335, %v319
  %v344 = vmul.f32 %v336, %v320
  %v345 = vmul.f32 %v337, %v321
  %v346 = vmul.f32 %v338, %v322
  %v347 = vmul.f32 %v339, %v323
  %v348 = vmul.f32 %v340, %v324
  %v349 = vmul.f32 %v341, %v325
  %v350 = vsub.f32 %v326, 0.055555556
  %v351 = vsub.f32 %v327, 0.055555556
  %v352 = vsub.f32 %v328, 0.055555556
  %v353 = vsub.f32 %v329, 0.055555556
  %v354 = vsub.f32 %v330, 0.055555556
  %v355 = vsub.f32 %v331, 0.055555556
  %v356 = vsub.f32 %v332, 0.055555556
  %v357 = vsub.f32 %v333, 0.055555556
  %vm358 = vcmp.lt.f32.partialorder %v326, 0.11111111
  %vm359 = vcmp.lt.f32.partialorder %v327, 0.11111111
  %vm360 = vcmp.lt.f32.partialorder %v328, 0.11111111
  %vm361 = vcmp.lt.f32.partialorder %v329, 0.11111111
  %vm362 = vcmp.lt.f32.partialorder %v330, 0.11111111
  %vm363 = vcmp.lt.f32.partialorder %v331, 0.11111111
  %vm364 = vcmp.lt.f32.partialorder %v332, 0.11111111
  %vm365 = vcmp.lt.f32.partialorder %v333, 0.11111111
  %v366 = vsel %vm358, %v342, %v350
  %v367 = vsel %vm359, %v343, %v351
  %v368 = vsel %vm360, %v344, %v352
  %v369 = vsel %vm361, %v345, %v353
  %v370 = vsel %vm362, %v346, %v354
  %v371 = vsel %vm363, %v347, %v355
  %v372 = vsel %vm364, %v348, %v356
  %v373 = vsel %vm365, %v349, %v357
  %v374 = vadd.f32 %v292, %v366
  %v375 = vadd.f32 %v293, %v367
  %v376 = vadd.f32 %v294, %v368
  %v377 = vadd.f32 %v295, %v369
  %v378 = vadd.f32 %v296, %v370
  %v379 = vadd.f32 %v297, %v371
  %v380 = vadd.f32 %v298, %v372
  %v381 = vadd.f32 %v299, %v373
  %s382 = scalar_lea.vmem %s44, 448
  %v383 = vld [vmem:[%s382] sm:$0xff]
  %v384 = vld [vmem:[%s382 + $0x8] sm:$0xff]
  %v385 = vld [vmem:[%s382 + $0x10] sm:$0xff]
  %v386 = vld [vmem:[%s382 + $0x18] sm:$0xff]
  %v387 = vld [vmem:[%s382 + $0x20] sm:$0xff]
  %v388 = vld [vmem:[%s382 + $0x28] sm:$0xff]
  %v389 = vld [vmem:[%s382 + $0x30] sm:$0xff]
  %v390 = vld [vmem:[%s382 + $0x38] sm:$0xff]
  %s391 = scalar_lea.vmem %s44, 1024
  %v392 = vld [vmem:[%s391] sm:$0xff]
  %v393 = vld [vmem:[%s391 + $0x8] sm:$0xff]
  %v394 = vld [vmem:[%s391 + $0x10] sm:$0xff]
  %v395 = vld [vmem:[%s391 + $0x18] sm:$0xff]
  %v396 = vld [vmem:[%s391 + $0x20] sm:$0xff]
  %v397 = vld [vmem:[%s391 + $0x28] sm:$0xff]
  %v398 = vld [vmem:[%s391 + $0x30] sm:$0xff]
  %v399 = vld [vmem:[%s391 + $0x38] sm:$0xff]
  %v400 = vsub.f32 %v383, %v392
  %v401 = vsub.f32 %v384, %v393
  %v402 = vsub.f32 %v385, %v394
  %v403 = vsub.f32 %v386, %v395
  %v404 = vsub.f32 %v387, %v396
  %v405 = vsub.f32 %v388, %v397
  %v406 = vsub.f32 %v389, %v398
  %v407 = vsub.f32 %v390, %v399
  %v408 = vand.u32 2147483647, %v400
  %v409 = vand.u32 2147483647, %v401
  %v410 = vand.u32 2147483647, %v402
  %v411 = vand.u32 2147483647, %v403
  %v412 = vand.u32 2147483647, %v404
  %v413 = vand.u32 2147483647, %v405
  %v414 = vand.u32 2147483647, %v406
  %v415 = vand.u32 2147483647, %v407
  %v416 = vmul.f32 %v400, 4.5
  %v417 = vmul.f32 %v401, 4.5
  %v418 = vmul.f32 %v402, 4.5
  %v419 = vmul.f32 %v403, 4.5
  %v420 = vmul.f32 %v404, 4.5
  %v421 = vmul.f32 %v405, 4.5
  %v422 = vmul.f32 %v406, 4.5
  %v423 = vmul.f32 %v407, 4.5
  %v424 = vmul.f32 %v416, %v400
  %v425 = vmul.f32 %v417, %v401
  %v426 = vmul.f32 %v418, %v402
  %v427 = vmul.f32 %v419, %v403
  %v428 = vmul.f32 %v420, %v404
  %v429 = vmul.f32 %v421, %v405
  %v430 = vmul.f32 %v422, %v406
  %v431 = vmul.f32 %v423, %v407
  %v432 = vsub.f32 %v408, 0.055555556
  %v433 = vsub.f32 %v409, 0.055555556
  %v434 = vsub.f32 %v410, 0.055555556
  %v435 = vsub.f32 %v411, 0.055555556
  %v436 = vsub.f32 %v412, 0.055555556
  %v437 = vsub.f32 %v413, 0.055555556
  %v438 = vsub.f32 %v414, 0.055555556
  %v439 = vsub.f32 %v415, 0.055555556
  %vm440 = vcmp.lt.f32.partialorder %v408, 0.11111111
  %vm441 = vcmp.lt.f32.partialorder %v409, 0.11111111
  %vm442 = vcmp.lt.f32.partialorder %v410, 0.11111111
  %vm443 = vcmp.lt.f32.partialorder %v411, 0.11111111
  %vm444 = vcmp.lt.f32.partialorder %v412, 0.11111111
  %vm445 = vcmp.lt.f32.partialorder %v413, 0.11111111
  %vm446 = vcmp.lt.f32.partialorder %v414, 0.11111111
  %vm447 = vcmp.lt.f32.partialorder %v415, 0.11111111
  %v448 = vsel %vm440, %v424, %v432
  %v449 = vsel %vm441, %v425, %v433
  %v450 = vsel %vm442, %v426, %v434
  %v451 = vsel %vm443, %v427, %v435
  %v452 = vsel %vm444, %v428, %v436
  %v453 = vsel %vm445, %v429, %v437
  %v454 = vsel %vm446, %v430, %v438
  %v455 = vsel %vm447, %v431, %v439
  %v456 = vadd.f32 %v374, %v448
  %v457 = vadd.f32 %v375, %v449
  %v458 = vadd.f32 %v376, %v450
  %v459 = vadd.f32 %v377, %v451
  %v460 = vadd.f32 %v378, %v452
  %v461 = vadd.f32 %v379, %v453
  %v462 = vadd.f32 %v380, %v454
  %v463 = vadd.f32 %v381, %v455
  %s464 = scalar_lea.vmem %s44, 512
  %v465 = vld [vmem:[%s464] sm:$0xff]
  %v466 = vld [vmem:[%s464 + $0x8] sm:$0xff]
  %v467 = vld [vmem:[%s464 + $0x10] sm:$0xff]
  %v468 = vld [vmem:[%s464 + $0x18] sm:$0xff]
  %v469 = vld [vmem:[%s464 + $0x20] sm:$0xff]
  %v470 = vld [vmem:[%s464 + $0x28] sm:$0xff]
  %v471 = vld [vmem:[%s464 + $0x30] sm:$0xff]
  %v472 = vld [vmem:[%s464 + $0x38] sm:$0xff]
  %s473 = scalar_lea.vmem %s44, 1088
  %v474 = vld [vmem:[%s473] sm:$0xff]
  %v475 = vld [vmem:[%s473 + $0x8] sm:$0xff]
  %v476 = vld [vmem:[%s473 + $0x10] sm:$0xff]
  %v477 = vld [vmem:[%s473 + $0x18] sm:$0xff]
  %v478 = vld [vmem:[%s473 + $0x20] sm:$0xff]
  %v479 = vld [vmem:[%s473 + $0x28] sm:$0xff]
  %v480 = vld [vmem:[%s473 + $0x30] sm:$0xff]
  %v481 = vld [vmem:[%s473 + $0x38] sm:$0xff]
  %v482 = vsub.f32 %v465, %v474
  %v483 = vsub.f32 %v466, %v475
  %v484 = vsub.f32 %v467, %v476
  %v485 = vsub.f32 %v468, %v477
  %v486 = vsub.f32 %v469, %v478
  %v487 = vsub.f32 %v470, %v479
  %v488 = vsub.f32 %v471, %v480
  %v489 = vsub.f32 %v472, %v481
  %v490 = vand.u32 2147483647, %v482
  %v491 = vand.u32 2147483647, %v483
  %v492 = vand.u32 2147483647, %v484
  %v493 = vand.u32 2147483647, %v485
  %v494 = vand.u32 2147483647, %v486
  %v495 = vand.u32 2147483647, %v487
  %v496 = vand.u32 2147483647, %v488
  %v497 = vand.u32 2147483647, %v489
  %v498 = vmul.f32 %v482, 4.5
  %v499 = vmul.f32 %v483, 4.5
  %v500 = vmul.f32 %v484, 4.5
  %v501 = vmul.f32 %v485, 4.5
  %v502 = vmul.f32 %v486, 4.5
  %v503 = vmul.f32 %v487, 4.5
  %v504 = vmul.f32 %v488, 4.5
  %v505 = vmul.f32 %v489, 4.5
  %v506 = vmul.f32 %v498, %v482
  %v507 = vmul.f32 %v499, %v483
  %v508 = vmul.f32 %v500, %v484
  %v509 = vmul.f32 %v501, %v485
  %v510 = vmul.f32 %v502, %v486
  %v511 = vmul.f32 %v503, %v487
  %v512 = vmul.f32 %v504, %v488
  %v513 = vmul.f32 %v505, %v489
  %v514 = vsub.f32 %v490, 0.055555556
  %v515 = vsub.f32 %v491, 0.055555556
  %v516 = vsub.f32 %v492, 0.055555556
  %v517 = vsub.f32 %v493, 0.055555556
  %v518 = vsub.f32 %v494, 0.055555556
  %v519 = vsub.f32 %v495, 0.055555556
  %v520 = vsub.f32 %v496, 0.055555556
  %v521 = vsub.f32 %v497, 0.055555556
  %vm522 = vcmp.lt.f32.partialorder %v490, 0.11111111
  %vm523 = vcmp.lt.f32.partialorder %v491, 0.11111111
  %vm524 = vcmp.lt.f32.partialorder %v492, 0.11111111
  %vm525 = vcmp.lt.f32.partialorder %v493, 0.11111111
  %vm526 = vcmp.lt.f32.partialorder %v494, 0.11111111
  %vm527 = vcmp.lt.f32.partialorder %v495, 0.11111111
  %vm528 = vcmp.lt.f32.partialorder %v496, 0.11111111
  %vm529 = vcmp.lt.f32.partialorder %v497, 0.11111111
  %v530 = vsel %vm522, %v506, %v514
  %v531 = vsel %vm523, %v507, %v515
  %v532 = vsel %vm524, %v508, %v516
  %v533 = vsel %vm525, %v509, %v517
  %v534 = vsel %vm526, %v510, %v518
  %v535 = vsel %vm527, %v511, %v519
  %v536 = vsel %vm528, %v512, %v520
  %v537 = vsel %vm529, %v513, %v521
  %v538 = vadd.f32 %v456, %v530
  %v539 = vadd.f32 %v457, %v531
  %v540 = vadd.f32 %v458, %v532
  %v541 = vadd.f32 %v459, %v533
  %v542 = vadd.f32 %v460, %v534
  %v543 = vadd.f32 %v461, %v535
  %v544 = vadd.f32 %v462, %v536
  %v545 = vadd.f32 %v463, %v537
  %s546 = scalar_lea.vmem %s44, 576
  %v547 = vld [vmem:[%s546] sm:$0xff]
  %v548 = vld [vmem:[%s546 + $0x8] sm:$0xff]
  %v549 = vld [vmem:[%s546 + $0x10] sm:$0xff]
  %v550 = vld [vmem:[%s546 + $0x18] sm:$0xff]
  %v551 = vld [vmem:[%s546 + $0x20] sm:$0xff]
  %v552 = vld [vmem:[%s546 + $0x28] sm:$0xff]
  %v553 = vld [vmem:[%s546 + $0x30] sm:$0xff]
  %v554 = vld [vmem:[%s546 + $0x38] sm:$0xff]
  %s555 = scalar_lea.vmem %s44, 1152
  %v556 = vld [vmem:[%s555] sm:$0xff]
  %v557 = vld [vmem:[%s555 + $0x8] sm:$0xff]
  %v558 = vld [vmem:[%s555 + $0x10] sm:$0xff]
  %v559 = vld [vmem:[%s555 + $0x18] sm:$0xff]
  %v560 = vld [vmem:[%s555 + $0x20] sm:$0xff]
  %v561 = vld [vmem:[%s555 + $0x28] sm:$0xff]
  %v562 = vld [vmem:[%s555 + $0x30] sm:$0xff]
  %v563 = vld [vmem:[%s555 + $0x38] sm:$0xff]
  %v564 = vsub.f32 %v547, %v556
  %v565 = vsub.f32 %v548, %v557
  %v566 = vsub.f32 %v549, %v558
  %v567 = vsub.f32 %v550, %v559
  %v568 = vsub.f32 %v551, %v560
  %v569 = vsub.f32 %v552, %v561
  %v570 = vsub.f32 %v553, %v562
  %v571 = vsub.f32 %v554, %v563
  %v572 = vand.u32 2147483647, %v564
  %v573 = vand.u32 2147483647, %v565
  %v574 = vand.u32 2147483647, %v566
  %v575 = vand.u32 2147483647, %v567
  %v576 = vand.u32 2147483647, %v568
  %v577 = vand.u32 2147483647, %v569
  %v578 = vand.u32 2147483647, %v570
  %v579 = vand.u32 2147483647, %v571
  %v580 = vmul.f32 %v564, 4.5
  %v581 = vmul.f32 %v565, 4.5
  %v582 = vmul.f32 %v566, 4.5
  %v583 = vmul.f32 %v567, 4.5
  %v584 = vmul.f32 %v568, 4.5
  %v585 = vmul.f32 %v569, 4.5
  %v586 = vmul.f32 %v570, 4.5
  %v587 = vmul.f32 %v571, 4.5
  %v588 = vmul.f32 %v580, %v564
  %v589 = vmul.f32 %v581, %v565
  %v590 = vmul.f32 %v582, %v566
  %v591 = vmul.f32 %v583, %v567
  %v592 = vmul.f32 %v584, %v568
  %v593 = vmul.f32 %v585, %v569
  %v594 = vmul.f32 %v586, %v570
  %v595 = vmul.f32 %v587, %v571
  %v596 = vsub.f32 %v572, 0.055555556
  %v597 = vsub.f32 %v573, 0.055555556
  %v598 = vsub.f32 %v574, 0.055555556
  %v599 = vsub.f32 %v575, 0.055555556
  %v600 = vsub.f32 %v576, 0.055555556
  %v601 = vsub.f32 %v577, 0.055555556
  %v602 = vsub.f32 %v578, 0.055555556
  %v603 = vsub.f32 %v579, 0.055555556
  %vm604 = vcmp.lt.f32.partialorder %v572, 0.11111111
  %vm605 = vcmp.lt.f32.partialorder %v573, 0.11111111
  %vm606 = vcmp.lt.f32.partialorder %v574, 0.11111111
  %vm607 = vcmp.lt.f32.partialorder %v575, 0.11111111
  %vm608 = vcmp.lt.f32.partialorder %v576, 0.11111111
  %vm609 = vcmp.lt.f32.partialorder %v577, 0.11111111
  %vm610 = vcmp.lt.f32.partialorder %v578, 0.11111111
  %vm611 = vcmp.lt.f32.partialorder %v579, 0.11111111
  %v612 = vsel %vm604, %v588, %v596
  %v613 = vsel %vm605, %v589, %v597
  %v614 = vsel %vm606, %v590, %v598
  %v615 = vsel %vm607, %v591, %v599
  %v616 = vsel %vm608, %v592, %v600
  %v617 = vsel %vm609, %v593, %v601
  %v618 = vsel %vm610, %v594, %v602
  %v619 = vsel %vm611, %v595, %v603
  %v620 = vadd.f32 %v538, %v612
  %v621 = vadd.f32 %v539, %v613
  %v622 = vadd.f32 %v540, %v614
  %v623 = vadd.f32 %v541, %v615
  %v624 = vadd.f32 %v542, %v616
  %v625 = vadd.f32 %v543, %v617
  %v626 = vadd.f32 %v544, %v618
  %v627 = vadd.f32 %v545, %v619
  %v628 = vld [vmem:[#allocation3] sm:$0xff]
  %v629 = vadd.f32 %v620, %v621
  %v630 = vadd.f32 %v629, %v622
  %v631 = vadd.f32 %v630, %v623
  %v632 = vadd.f32 %v631, %v624
  %v633 = vadd.f32 %v632, %v625
  %v634 = vadd.f32 %v633, %v626
  %v635 = vadd.f32 %v634, %v627
  %v636 = vadd.f32 %v628, %v635
  %637 = vst [vmem:[#allocation3] sm:$0xff] %v636
  %v638 = vld [vmem:[%s52] sm:$0xff]
  %v639 = vld [vmem:[%s52 + $0x8] sm:$0xff]
  %v640 = vld [vmem:[%s52 + $0x10] sm:$0xff]
  %v641 = vld [vmem:[%s52 + $0x18] sm:$0xff]
  %v642 = vld [vmem:[%s52 + $0x20] sm:$0xff]
  %v643 = vld [vmem:[%s52 + $0x28] sm:$0xff]
  %v644 = vld [vmem:[%s52 + $0x30] sm:$0xff]
  %v645 = vld [vmem:[%s52 + $0x38] sm:$0xff]
  %v646 = vld [vmem:[%s44] sm:$0xff]
  %v647 = vld [vmem:[%s44 + $0x8] sm:$0xff]
  %v648 = vld [vmem:[%s44 + $0x10] sm:$0xff]
  %v649 = vld [vmem:[%s44 + $0x18] sm:$0xff]
  %v650 = vld [vmem:[%s44 + $0x20] sm:$0xff]
  %v651 = vld [vmem:[%s44 + $0x28] sm:$0xff]
  %v652 = vld [vmem:[%s44 + $0x30] sm:$0xff]
  %v653 = vld [vmem:[%s44 + $0x38] sm:$0xff]
  %v654 = vand.u32 2147483647, %v646
  %v655 = vand.u32 2147483647, %v647
  %v656 = vand.u32 2147483647, %v648
  %v657 = vand.u32 2147483647, %v649
  %v658 = vand.u32 2147483647, %v650
  %v659 = vand.u32 2147483647, %v651
  %v660 = vand.u32 2147483647, %v652
  %v661 = vand.u32 2147483647, %v653
  %v662 = vsub.f32 0.0, %v654
  %v663 = vsub.f32 0.0, %v655
  %v664 = vsub.f32 0.0, %v656
  %v665 = vsub.f32 0.0, %v657
  %v666 = vsub.f32 0.0, %v658
  %v667 = vsub.f32 0.0, %v659
  %v668 = vsub.f32 0.0, %v660
  %v669 = vsub.f32 0.0, %v661
  %v670 = vmul.f32 %v662, 1.442695
  %v671 = vpow.pop %v670
  %v672 = vmul.f32 %v663, 1.442695
  %v673 = vpow.pop %v672
  %v674 = vmul.f32 %v664, 1.442695
  %v675 = vpow.pop %v674
  %v676 = vmul.f32 %v665, 1.442695
  %v677 = vpow.pop %v676
  %v678 = vmul.f32 %v666, 1.442695
  %v679 = vpow.pop %v678
  %v680 = vmul.f32 %v667, 1.442695
  %v681 = vpow.pop %v680
  %v682 = vmul.f32 %v668, 1.442695
  %v683 = vpow.pop %v682
  %v684 = vmul.f32 %v669, 1.442695
  %v685 = vpow.pop %v684
  %v686 = vadd.f32 %v671, 1.0
  %v687 = vadd.f32 %v673, 1.0
  %v688 = vadd.f32 %v675, 1.0
  %v689 = vadd.f32 %v677, 1.0
  %v690 = vadd.f32 %v679, 1.0
  %v691 = vadd.f32 %v681, 1.0
  %v692 = vadd.f32 %v683, 1.0
  %v693 = vadd.f32 %v685, 1.0
  %v694 = vlog2.pop %v686
  %v695 = vmul.f32 %v694, 0.6931472
  %v696 = vlog2.pop %v687
  %v697 = vmul.f32 %v696, 0.6931472
  %v698 = vlog2.pop %v688
  %v699 = vmul.f32 %v698, 0.6931472
  %v700 = vlog2.pop %v689
  %v701 = vmul.f32 %v700, 0.6931472
  %v702 = vlog2.pop %v690
  %v703 = vmul.f32 %v702, 0.6931472
  %v704 = vlog2.pop %v691
  %v705 = vmul.f32 %v704, 0.6931472
  %v706 = vlog2.pop %v692
  %v707 = vmul.f32 %v706, 0.6931472
  %v708 = vlog2.pop %v693
  %v709 = vmul.f32 %v708, 0.6931472
  %v710 = vmin.f32 %v646, 0.0
  %v711 = vmin.f32 %v647, 0.0
  %v712 = vmin.f32 %v648, 0.0
  %v713 = vmin.f32 %v649, 0.0
  %v714 = vmin.f32 %v650, 0.0
  %v715 = vmin.f32 %v651, 0.0
  %v716 = vmin.f32 %v652, 0.0
  %v717 = vmin.f32 %v653, 0.0
  %v718 = vsub.f32 %v710, %v695
  %v719 = vsub.f32 %v711, %v697
  %v720 = vsub.f32 %v712, %v699
  %v721 = vsub.f32 %v713, %v701
  %v722 = vsub.f32 %v714, %v703
  %v723 = vsub.f32 %v715, %v705
  %v724 = vsub.f32 %v716, %v707
  %v725 = vsub.f32 %v717, %v709
  %v726 = vmax.f32 %v718, -100.0
  %v727 = vmax.f32 %v719, -100.0
  %v728 = vmax.f32 %v720, -100.0
  %v729 = vmax.f32 %v721, -100.0
  %v730 = vmax.f32 %v722, -100.0
  %v731 = vmax.f32 %v723, -100.0
  %v732 = vmax.f32 %v724, -100.0
  %v733 = vmax.f32 %v725, -100.0
  %v734 = vmax.f32 %v646, 0.0
  %v735 = vmax.f32 %v647, 0.0
  %v736 = vmax.f32 %v648, 0.0
  %v737 = vmax.f32 %v649, 0.0
  %v738 = vmax.f32 %v650, 0.0
  %v739 = vmax.f32 %v651, 0.0
  %v740 = vmax.f32 %v652, 0.0
  %v741 = vmax.f32 %v653, 0.0
  %v742 = vsub.f32 0.0, %v734
  %v743 = vsub.f32 0.0, %v735
  %v744 = vsub.f32 0.0, %v736
  %v745 = vsub.f32 0.0, %v737
  %v746 = vsub.f32 0.0, %v738
  %v747 = vsub.f32 0.0, %v739
  %v748 = vsub.f32 0.0, %v740
  %v749 = vsub.f32 0.0, %v741
  %v750 = vsub.f32 %v742, %v695
  %v751 = vsub.f32 %v743, %v697
  %v752 = vsub.f32 %v744, %v699
  %v753 = vsub.f32 %v745, %v701
  %v754 = vsub.f32 %v746, %v703
  %v755 = vsub.f32 %v747, %v705
  %v756 = vsub.f32 %v748, %v707
  %v757 = vsub.f32 %v749, %v709
  %v758 = vmax.f32 %v750, -100.0
  %v759 = vmax.f32 %v751, -100.0
  %v760 = vmax.f32 %v752, -100.0
  %v761 = vmax.f32 %v753, -100.0
  %v762 = vmax.f32 %v754, -100.0
  %v763 = vmax.f32 %v755, -100.0
  %v764 = vmax.f32 %v756, -100.0
  %v765 = vmax.f32 %v757, -100.0
  %v766 = vmul.f32 %v726, 1.442695
  %v767 = vpow.pop %v766
  %v768 = vmul.f32 %v727, 1.442695
  %v769 = vpow.pop %v768
  %v770 = vmul.f32 %v728, 1.442695
  %v771 = vpow.pop %v770
  %v772 = vmul.f32 %v729, 1.442695
  %v773 = vpow.pop %v772
  %v774 = vmul.f32 %v730, 1.442695
  %v775 = vpow.pop %v774
  %v776 = vmul.f32 %v731, 1.442695
  %v777 = vpow.pop %v776
  %v778 = vmul.f32 %v732, 1.442695
  %v779 = vpow.pop %v778
  %v780 = vmul.f32 %v733, 1.442695
  %v781 = vpow.pop %v780
  %v782 = vsub.f32 1.0, %v767
  %v783 = vsub.f32 1.0, %v769
  %v784 = vsub.f32 1.0, %v771
  %v785 = vsub.f32 1.0, %v773
  %v786 = vsub.f32 1.0, %v775
  %v787 = vsub.f32 1.0, %v777
  %v788 = vsub.f32 1.0, %v779
  %v789 = vsub.f32 1.0, %v781
  %v790 = vmul.f32 %v767, %v767
  %v791 = vmul.f32 %v769, %v769
  %v792 = vmul.f32 %v771, %v771
  %v793 = vmul.f32 %v773, %v773
  %v794 = vmul.f32 %v775, %v775
  %v795 = vmul.f32 %v777, %v777
  %v796 = vmul.f32 %v779, %v779
  %v797 = vmul.f32 %v781, %v781
  %v798 = vmul.f32 %v782, %v782
  %v799 = vmul.f32 %v783, %v783
  %v800 = vmul.f32 %v784, %v784
  %v801 = vmul.f32 %v785, %v785
  %v802 = vmul.f32 %v786, %v786
  %v803 = vmul.f32 %v787, %v787
  %v804 = vmul.f32 %v788, %v788
  %v805 = vmul.f32 %v789, %v789
  %vm806 = vcmp.eq.s32.totalorder %v638, 0
  %vm807 = vcmp.eq.s32.totalorder %v639, 0
  %vm808 = vcmp.eq.s32.totalorder %v640, 0
  %vm809 = vcmp.eq.s32.totalorder %v641, 0
  %vm810 = vcmp.eq.s32.totalorder %v642, 0
  %vm811 = vcmp.eq.s32.totalorder %v643, 0
  %vm812 = vcmp.eq.s32.totalorder %v644, 0
  %vm813 = vcmp.eq.s32.totalorder %v645, 0
  %v814 = vmul.f32 %v798, 0.25
  %v815 = vmul.f32 %v799, 0.25
  %v816 = vmul.f32 %v800, 0.25
  %v817 = vmul.f32 %v801, 0.25
  %v818 = vmul.f32 %v802, 0.25
  %v819 = vmul.f32 %v803, 0.25
  %v820 = vmul.f32 %v804, 0.25
  %v821 = vmul.f32 %v805, 0.25
  %v822 = vsub.f32 0.0, %v726
  %v823 = vsub.f32 0.0, %v727
  %v824 = vsub.f32 0.0, %v728
  %v825 = vsub.f32 0.0, %v729
  %v826 = vsub.f32 0.0, %v730
  %v827 = vsub.f32 0.0, %v731
  %v828 = vsub.f32 0.0, %v732
  %v829 = vsub.f32 0.0, %v733
  %v830 = vmul.f32 %v814, %v822
  %v831 = vmul.f32 %v815, %v823
  %v832 = vmul.f32 %v816, %v824
  %v833 = vmul.f32 %v817, %v825
  %v834 = vmul.f32 %v818, %v826
  %v835 = vmul.f32 %v819, %v827
  %v836 = vmul.f32 %v820, %v828
  %v837 = vmul.f32 %v821, %v829
  %v838 = vmul.f32 %v790, 0.75
  %v839 = vmul.f32 %v791, 0.75
  %v840 = vmul.f32 %v792, 0.75
  %v841 = vmul.f32 %v793, 0.75
  %v842 = vmul.f32 %v794, 0.75
  %v843 = vmul.f32 %v795, 0.75
  %v844 = vmul.f32 %v796, 0.75
  %v845 = vmul.f32 %v797, 0.75
  %v846 = vsub.f32 0.0, %v758
  %v847 = vsub.f32 0.0, %v759
  %v848 = vsub.f32 0.0, %v760
  %v849 = vsub.f32 0.0, %v761
  %v850 = vsub.f32 0.0, %v762
  %v851 = vsub.f32 0.0, %v763
  %v852 = vsub.f32 0.0, %v764
  %v853 = vsub.f32 0.0, %v765
  %v854 = vmul.f32 %v838, %v846
  %v855 = vmul.f32 %v839, %v847
  %v856 = vmul.f32 %v840, %v848
  %v857 = vmul.f32 %v841, %v849
  %v858 = vmul.f32 %v842, %v850
  %v859 = vmul.f32 %v843, %v851
  %v860 = vmul.f32 %v844, %v852
  %v861 = vmul.f32 %v845, %v853
  %v862 = vsel %vm806, %v830, %v854
  %v863 = vsel %vm807, %v831, %v855
  %v864 = vsel %vm808, %v832, %v856
  %v865 = vsel %vm809, %v833, %v857
  %v866 = vsel %vm810, %v834, %v858
  %v867 = vsel %vm811, %v835, %v859
  %v868 = vsel %vm812, %v836, %v860
  %v869 = vsel %vm813, %v837, %v861
  %s870 = scalar_lea.vmem %s44, 64
  %v871 = vld [vmem:[%s870] sm:$0xff]
  %v872 = vld [vmem:[%s870 + $0x8] sm:$0xff]
  %v873 = vld [vmem:[%s870 + $0x10] sm:$0xff]
  %v874 = vld [vmem:[%s870 + $0x18] sm:$0xff]
  %v875 = vld [vmem:[%s870 + $0x20] sm:$0xff]
  %v876 = vld [vmem:[%s870 + $0x28] sm:$0xff]
  %v877 = vld [vmem:[%s870 + $0x30] sm:$0xff]
  %v878 = vld [vmem:[%s870 + $0x38] sm:$0xff]
  %v879 = vand.u32 2147483647, %v871
  %v880 = vand.u32 2147483647, %v872
  %v881 = vand.u32 2147483647, %v873
  %v882 = vand.u32 2147483647, %v874
  %v883 = vand.u32 2147483647, %v875
  %v884 = vand.u32 2147483647, %v876
  %v885 = vand.u32 2147483647, %v877
  %v886 = vand.u32 2147483647, %v878
  %v887 = vsub.f32 0.0, %v879
  %v888 = vsub.f32 0.0, %v880
  %v889 = vsub.f32 0.0, %v881
  %v890 = vsub.f32 0.0, %v882
  %v891 = vsub.f32 0.0, %v883
  %v892 = vsub.f32 0.0, %v884
  %v893 = vsub.f32 0.0, %v885
  %v894 = vsub.f32 0.0, %v886
  %v895 = vmul.f32 %v887, 1.442695
  %v896 = vpow.pop %v895
  %v897 = vmul.f32 %v888, 1.442695
  %v898 = vpow.pop %v897
  %v899 = vmul.f32 %v889, 1.442695
  %v900 = vpow.pop %v899
  %v901 = vmul.f32 %v890, 1.442695
  %v902 = vpow.pop %v901
  %v903 = vmul.f32 %v891, 1.442695
  %v904 = vpow.pop %v903
  %v905 = vmul.f32 %v892, 1.442695
  %v906 = vpow.pop %v905
  %v907 = vmul.f32 %v893, 1.442695
  %v908 = vpow.pop %v907
  %v909 = vmul.f32 %v894, 1.442695
  %v910 = vpow.pop %v909
  %v911 = vadd.f32 %v896, 1.0
  %v912 = vadd.f32 %v898, 1.0
  %v913 = vadd.f32 %v900, 1.0
  %v914 = vadd.f32 %v902, 1.0
  %v915 = vadd.f32 %v904, 1.0
  %v916 = vadd.f32 %v906, 1.0
  %v917 = vadd.f32 %v908, 1.0
  %v918 = vadd.f32 %v910, 1.0
  %v919 = vlog2.pop %v911
  %v920 = vmul.f32 %v919, 0.6931472
  %v921 = vlog2.pop %v912
  %v922 = vmul.f32 %v921, 0.6931472
  %v923 = vlog2.pop %v913
  %v924 = vmul.f32 %v923, 0.6931472
  %v925 = vlog2.pop %v914
  %v926 = vmul.f32 %v925, 0.6931472
  %v927 = vlog2.pop %v915
  %v928 = vmul.f32 %v927, 0.6931472
  %v929 = vlog2.pop %v916
  %v930 = vmul.f32 %v929, 0.6931472
  %v931 = vlog2.pop %v917
  %v932 = vmul.f32 %v931, 0.6931472
  %v933 = vlog2.pop %v918
  %v934 = vmul.f32 %v933, 0.6931472
  %v935 = vmin.f32 %v871, 0.0
  %v936 = vmin.f32 %v872, 0.0
  %v937 = vmin.f32 %v873, 0.0
  %v938 = vmin.f32 %v874, 0.0
  %v939 = vmin.f32 %v875, 0.0
  %v940 = vmin.f32 %v876, 0.0
  %v941 = vmin.f32 %v877, 0.0
  %v942 = vmin.f32 %v878, 0.0
  %v943 = vsub.f32 %v935, %v920
  %v944 = vsub.f32 %v936, %v922
  %v945 = vsub.f32 %v937, %v924
  %v946 = vsub.f32 %v938, %v926
  %v947 = vsub.f32 %v939, %v928
  %v948 = vsub.f32 %v940, %v930
  %v949 = vsub.f32 %v941, %v932
  %v950 = vsub.f32 %v942, %v934
  %v951 = vmax.f32 %v943, -100.0
  %v952 = vmax.f32 %v944, -100.0
  %v953 = vmax.f32 %v945, -100.0
  %v954 = vmax.f32 %v946, -100.0
  %v955 = vmax.f32 %v947, -100.0
  %v956 = vmax.f32 %v948, -100.0
  %v957 = vmax.f32 %v949, -100.0
  %v958 = vmax.f32 %v950, -100.0
  %v959 = vmax.f32 %v871, 0.0
  %v960 = vmax.f32 %v872, 0.0
  %v961 = vmax.f32 %v873, 0.0
  %v962 = vmax.f32 %v874, 0.0
  %v963 = vmax.f32 %v875, 0.0
  %v964 = vmax.f32 %v876, 0.0
  %v965 = vmax.f32 %v877, 0.0
  %v966 = vmax.f32 %v878, 0.0
  %v967 = vsub.f32 0.0, %v959
  %v968 = vsub.f32 0.0, %v960
  %v969 = vsub.f32 0.0, %v961
  %v970 = vsub.f32 0.0, %v962
  %v971 = vsub.f32 0.0, %v963
  %v972 = vsub.f32 0.0, %v964
  %v973 = vsub.f32 0.0, %v965
  %v974 = vsub.f32 0.0, %v966
  %v975 = vsub.f32 %v967, %v920
  %v976 = vsub.f32 %v968, %v922
  %v977 = vsub.f32 %v969, %v924
  %v978 = vsub.f32 %v970, %v926
  %v979 = vsub.f32 %v971, %v928
  %v980 = vsub.f32 %v972, %v930
  %v981 = vsub.f32 %v973, %v932
  %v982 = vsub.f32 %v974, %v934
  %v983 = vmax.f32 %v975, -100.0
  %v984 = vmax.f32 %v976, -100.0
  %v985 = vmax.f32 %v977, -100.0
  %v986 = vmax.f32 %v978, -100.0
  %v987 = vmax.f32 %v979, -100.0
  %v988 = vmax.f32 %v980, -100.0
  %v989 = vmax.f32 %v981, -100.0
  %v990 = vmax.f32 %v982, -100.0
  %v991 = vmul.f32 %v951, 1.442695
  %v992 = vpow.pop %v991
  %v993 = vmul.f32 %v952, 1.442695
  %v994 = vpow.pop %v993
  %v995 = vmul.f32 %v953, 1.442695
  %v996 = vpow.pop %v995
  %v997 = vmul.f32 %v954, 1.442695
  %v998 = vpow.pop %v997
  %v999 = vmul.f32 %v955, 1.442695
  %v1000 = vpow.pop %v999
  %v1001 = vmul.f32 %v956, 1.442695
  %v1002 = vpow.pop %v1001
  %v1003 = vmul.f32 %v957, 1.442695
  %v1004 = vpow.pop %v1003
  %v1005 = vmul.f32 %v958, 1.442695
  %v1006 = vpow.pop %v1005
  %v1007 = vsub.f32 1.0, %v992
  %v1008 = vsub.f32 1.0, %v994
  %v1009 = vsub.f32 1.0, %v996
  %v1010 = vsub.f32 1.0, %v998
  %v1011 = vsub.f32 1.0, %v1000
  %v1012 = vsub.f32 1.0, %v1002
  %v1013 = vsub.f32 1.0, %v1004
  %v1014 = vsub.f32 1.0, %v1006
  %v1015 = vmul.f32 %v992, %v992
  %v1016 = vmul.f32 %v994, %v994
  %v1017 = vmul.f32 %v996, %v996
  %v1018 = vmul.f32 %v998, %v998
  %v1019 = vmul.f32 %v1000, %v1000
  %v1020 = vmul.f32 %v1002, %v1002
  %v1021 = vmul.f32 %v1004, %v1004
  %v1022 = vmul.f32 %v1006, %v1006
  %v1023 = vmul.f32 %v1007, %v1007
  %v1024 = vmul.f32 %v1008, %v1008
  %v1025 = vmul.f32 %v1009, %v1009
  %v1026 = vmul.f32 %v1010, %v1010
  %v1027 = vmul.f32 %v1011, %v1011
  %v1028 = vmul.f32 %v1012, %v1012
  %v1029 = vmul.f32 %v1013, %v1013
  %v1030 = vmul.f32 %v1014, %v1014
  %vm1031 = vcmp.eq.s32.totalorder %v638, 1
  %vm1032 = vcmp.eq.s32.totalorder %v639, 1
  %vm1033 = vcmp.eq.s32.totalorder %v640, 1
  %vm1034 = vcmp.eq.s32.totalorder %v641, 1
  %vm1035 = vcmp.eq.s32.totalorder %v642, 1
  %vm1036 = vcmp.eq.s32.totalorder %v643, 1
  %vm1037 = vcmp.eq.s32.totalorder %v644, 1
  %vm1038 = vcmp.eq.s32.totalorder %v645, 1
  %v1039 = vmul.f32 %v1023, 0.25
  %v1040 = vmul.f32 %v1024, 0.25
  %v1041 = vmul.f32 %v1025, 0.25
  %v1042 = vmul.f32 %v1026, 0.25
  %v1043 = vmul.f32 %v1027, 0.25
  %v1044 = vmul.f32 %v1028, 0.25
  %v1045 = vmul.f32 %v1029, 0.25
  %v1046 = vmul.f32 %v1030, 0.25
  %v1047 = vsub.f32 0.0, %v951
  %v1048 = vsub.f32 0.0, %v952
  %v1049 = vsub.f32 0.0, %v953
  %v1050 = vsub.f32 0.0, %v954
  %v1051 = vsub.f32 0.0, %v955
  %v1052 = vsub.f32 0.0, %v956
  %v1053 = vsub.f32 0.0, %v957
  %v1054 = vsub.f32 0.0, %v958
  %v1055 = vmul.f32 %v1039, %v1047
  %v1056 = vmul.f32 %v1040, %v1048
  %v1057 = vmul.f32 %v1041, %v1049
  %v1058 = vmul.f32 %v1042, %v1050
  %v1059 = vmul.f32 %v1043, %v1051
  %v1060 = vmul.f32 %v1044, %v1052
  %v1061 = vmul.f32 %v1045, %v1053
  %v1062 = vmul.f32 %v1046, %v1054
  %v1063 = vmul.f32 %v1015, 0.75
  %v1064 = vmul.f32 %v1016, 0.75
  %v1065 = vmul.f32 %v1017, 0.75
  %v1066 = vmul.f32 %v1018, 0.75
  %v1067 = vmul.f32 %v1019, 0.75
  %v1068 = vmul.f32 %v1020, 0.75
  %v1069 = vmul.f32 %v1021, 0.75
  %v1070 = vmul.f32 %v1022, 0.75
  %v1071 = vsub.f32 0.0, %v983
  %v1072 = vsub.f32 0.0, %v984
  %v1073 = vsub.f32 0.0, %v985
  %v1074 = vsub.f32 0.0, %v986
  %v1075 = vsub.f32 0.0, %v987
  %v1076 = vsub.f32 0.0, %v988
  %v1077 = vsub.f32 0.0, %v989
  %v1078 = vsub.f32 0.0, %v990
  %v1079 = vmul.f32 %v1063, %v1071
  %v1080 = vmul.f32 %v1064, %v1072
  %v1081 = vmul.f32 %v1065, %v1073
  %v1082 = vmul.f32 %v1066, %v1074
  %v1083 = vmul.f32 %v1067, %v1075
  %v1084 = vmul.f32 %v1068, %v1076
  %v1085 = vmul.f32 %v1069, %v1077
  %v1086 = vmul.f32 %v1070, %v1078
  %v1087 = vsel %vm1031, %v1055, %v1079
  %v1088 = vsel %vm1032, %v1056, %v1080
  %v1089 = vsel %vm1033, %v1057, %v1081
  %v1090 = vsel %vm1034, %v1058, %v1082
  %v1091 = vsel %vm1035, %v1059, %v1083
  %v1092 = vsel %vm1036, %v1060, %v1084
  %v1093 = vsel %vm1037, %v1061, %v1085
  %v1094 = vsel %vm1038, %v1062, %v1086
  %v1095 = vadd.f32 %v862, %v1087
  %v1096 = vadd.f32 %v863, %v1088
  %v1097 = vadd.f32 %v864, %v1089
  %v1098 = vadd.f32 %v865, %v1090
  %v1099 = vadd.f32 %v866, %v1091
  %v1100 = vadd.f32 %v867, %v1092
  %v1101 = vadd.f32 %v868, %v1093
  %v1102 = vadd.f32 %v869, %v1094
  %s1103 = scalar_lea.vmem %s44, 128
  %v1104 = vld [vmem:[%s1103] sm:$0xff]
  %v1105 = vld [vmem:[%s1103 + $0x8] sm:$0xff]
  %v1106 = vld [vmem:[%s1103 + $0x10] sm:$0xff]
  %v1107 = vld [vmem:[%s1103 + $0x18] sm:$0xff]
  %v1108 = vld [vmem:[%s1103 + $0x20] sm:$0xff]
  %v1109 = vld [vmem:[%s1103 + $0x28] sm:$0xff]
  %v1110 = vld [vmem:[%s1103 + $0x30] sm:$0xff]
  %v1111 = vld [vmem:[%s1103 + $0x38] sm:$0xff]
  %v1112 = vand.u32 2147483647, %v1104
  %v1113 = vand.u32 2147483647, %v1105
  %v1114 = vand.u32 2147483647, %v1106
  %v1115 = vand.u32 2147483647, %v1107
  %v1116 = vand.u32 2147483647, %v1108
  %v1117 = vand.u32 2147483647, %v1109
  %v1118 = vand.u32 2147483647, %v1110
  %v1119 = vand.u32 2147483647, %v1111
  %v1120 = vsub.f32 0.0, %v1112
  %v1121 = vsub.f32 0.0, %v1113
  %v1122 = vsub.f32 0.0, %v1114
  %v1123 = vsub.f32 0.0, %v1115
  %v1124 = vsub.f32 0.0, %v1116
  %v1125 = vsub.f32 0.0, %v1117
  %v1126 = vsub.f32 0.0, %v1118
  %v1127 = vsub.f32 0.0, %v1119
  %v1128 = vmul.f32 %v1120, 1.442695
  %v1129 = vpow.pop %v1128
  %v1130 = vmul.f32 %v1121, 1.442695
  %v1131 = vpow.pop %v1130
  %v1132 = vmul.f32 %v1122, 1.442695
  %v1133 = vpow.pop %v1132
  %v1134 = vmul.f32 %v1123, 1.442695
  %v1135 = vpow.pop %v1134
  %v1136 = vmul.f32 %v1124, 1.442695
  %v1137 = vpow.pop %v1136
  %v1138 = vmul.f32 %v1125, 1.442695
  %v1139 = vpow.pop %v1138
  %v1140 = vmul.f32 %v1126, 1.442695
  %v1141 = vpow.pop %v1140
  %v1142 = vmul.f32 %v1127, 1.442695
  %v1143 = vpow.pop %v1142
  %v1144 = vadd.f32 %v1129, 1.0
  %v1145 = vadd.f32 %v1131, 1.0
  %v1146 = vadd.f32 %v1133, 1.0
  %v1147 = vadd.f32 %v1135, 1.0
  %v1148 = vadd.f32 %v1137, 1.0
  %v1149 = vadd.f32 %v1139, 1.0
  %v1150 = vadd.f32 %v1141, 1.0
  %v1151 = vadd.f32 %v1143, 1.0
  %v1152 = vlog2.pop %v1144
  %v1153 = vmul.f32 %v1152, 0.6931472
  %v1154 = vlog2.pop %v1145
  %v1155 = vmul.f32 %v1154, 0.6931472
  %v1156 = vlog2.pop %v1146
  %v1157 = vmul.f32 %v1156, 0.6931472
  %v1158 = vlog2.pop %v1147
  %v1159 = vmul.f32 %v1158, 0.6931472
  %v1160 = vlog2.pop %v1148
  %v1161 = vmul.f32 %v1160, 0.6931472
  %v1162 = vlog2.pop %v1149
  %v1163 = vmul.f32 %v1162, 0.6931472
  %v1164 = vlog2.pop %v1150
  %v1165 = vmul.f32 %v1164, 0.6931472
  %v1166 = vlog2.pop %v1151
  %v1167 = vmul.f32 %v1166, 0.6931472
  %v1168 = vmin.f32 %v1104, 0.0
  %v1169 = vmin.f32 %v1105, 0.0
  %v1170 = vmin.f32 %v1106, 0.0
  %v1171 = vmin.f32 %v1107, 0.0
  %v1172 = vmin.f32 %v1108, 0.0
  %v1173 = vmin.f32 %v1109, 0.0
  %v1174 = vmin.f32 %v1110, 0.0
  %v1175 = vmin.f32 %v1111, 0.0
  %v1176 = vsub.f32 %v1168, %v1153
  %v1177 = vsub.f32 %v1169, %v1155
  %v1178 = vsub.f32 %v1170, %v1157
  %v1179 = vsub.f32 %v1171, %v1159
  %v1180 = vsub.f32 %v1172, %v1161
  %v1181 = vsub.f32 %v1173, %v1163
  %v1182 = vsub.f32 %v1174, %v1165
  %v1183 = vsub.f32 %v1175, %v1167
  %v1184 = vmax.f32 %v1176, -100.0
  %v1185 = vmax.f32 %v1177, -100.0
  %v1186 = vmax.f32 %v1178, -100.0
  %v1187 = vmax.f32 %v1179, -100.0
  %v1188 = vmax.f32 %v1180, -100.0
  %v1189 = vmax.f32 %v1181, -100.0
  %v1190 = vmax.f32 %v1182, -100.0
  %v1191 = vmax.f32 %v1183, -100.0
  %v1192 = vmax.f32 %v1104, 0.0
  %v1193 = vmax.f32 %v1105, 0.0
  %v1194 = vmax.f32 %v1106, 0.0
  %v1195 = vmax.f32 %v1107, 0.0
  %v1196 = vmax.f32 %v1108, 0.0
  %v1197 = vmax.f32 %v1109, 0.0
  %v1198 = vmax.f32 %v1110, 0.0
  %v1199 = vmax.f32 %v1111, 0.0
  %v1200 = vsub.f32 0.0, %v1192
  %v1201 = vsub.f32 0.0, %v1193
  %v1202 = vsub.f32 0.0, %v1194
  %v1203 = vsub.f32 0.0, %v1195
  %v1204 = vsub.f32 0.0, %v1196
  %v1205 = vsub.f32 0.0, %v1197
  %v1206 = vsub.f32 0.0, %v1198
  %v1207 = vsub.f32 0.0, %v1199
  %v1208 = vsub.f32 %v1200, %v1153
  %v1209 = vsub.f32 %v1201, %v1155
  %v1210 = vsub.f32 %v1202, %v1157
  %v1211 = vsub.f32 %v1203, %v1159
  %v1212 = vsub.f32 %v1204, %v1161
  %v1213 = vsub.f32 %v1205, %v1163
  %v1214 = vsub.f32 %v1206, %v1165
  %v1215 = vsub.f32 %v1207, %v1167
  %v1216 = vmax.f32 %v1208, -100.0
  %v1217 = vmax.f32 %v1209, -100.0
  %v1218 = vmax.f32 %v1210, -100.0
  %v1219 = vmax.f32 %v1211, -100.0
  %v1220 = vmax.f32 %v1212, -100.0
  %v1221 = vmax.f32 %v1213, -100.0
  %v1222 = vmax.f32 %v1214, -100.0
  %v1223 = vmax.f32 %v1215, -100.0
  %v1224 = vmul.f32 %v1184, 1.442695
  %v1225 = vpow.pop %v1224
  %v1226 = vmul.f32 %v1185, 1.442695
  %v1227 = vpow.pop %v1226
  %v1228 = vmul.f32 %v1186, 1.442695
  %v1229 = vpow.pop %v1228
  %v1230 = vmul.f32 %v1187, 1.442695
  %v1231 = vpow.pop %v1230
  %v1232 = vmul.f32 %v1188, 1.442695
  %v1233 = vpow.pop %v1232
  %v1234 = vmul.f32 %v1189, 1.442695
  %v1235 = vpow.pop %v1234
  %v1236 = vmul.f32 %v1190, 1.442695
  %v1237 = vpow.pop %v1236
  %v1238 = vmul.f32 %v1191, 1.442695
  %v1239 = vpow.pop %v1238
  %v1240 = vsub.f32 1.0, %v1225
  %v1241 = vsub.f32 1.0, %v1227
  %v1242 = vsub.f32 1.0, %v1229
  %v1243 = vsub.f32 1.0, %v1231
  %v1244 = vsub.f32 1.0, %v1233
  %v1245 = vsub.f32 1.0, %v1235
  %v1246 = vsub.f32 1.0, %v1237
  %v1247 = vsub.f32 1.0, %v1239
  %v1248 = vmul.f32 %v1225, %v1225
  %v1249 = vmul.f32 %v1227, %v1227
  %v1250 = vmul.f32 %v1229, %v1229
  %v1251 = vmul.f32 %v1231, %v1231
  %v1252 = vmul.f32 %v1233, %v1233
  %v1253 = vmul.f32 %v1235, %v1235
  %v1254 = vmul.f32 %v1237, %v1237
  %v1255 = vmul.f32 %v1239, %v1239
  %v1256 = vmul.f32 %v1240, %v1240
  %v1257 = vmul.f32 %v1241, %v1241
  %v1258 = vmul.f32 %v1242, %v1242
  %v1259 = vmul.f32 %v1243, %v1243
  %v1260 = vmul.f32 %v1244, %v1244
  %v1261 = vmul.f32 %v1245, %v1245
  %v1262 = vmul.f32 %v1246, %v1246
  %v1263 = vmul.f32 %v1247, %v1247
  %vm1264 = vcmp.eq.s32.totalorder %v638, 2
  %vm1265 = vcmp.eq.s32.totalorder %v639, 2
  %vm1266 = vcmp.eq.s32.totalorder %v640, 2
  %vm1267 = vcmp.eq.s32.totalorder %v641, 2
  %vm1268 = vcmp.eq.s32.totalorder %v642, 2
  %vm1269 = vcmp.eq.s32.totalorder %v643, 2
  %vm1270 = vcmp.eq.s32.totalorder %v644, 2
  %vm1271 = vcmp.eq.s32.totalorder %v645, 2
  %v1272 = vmul.f32 %v1256, 0.25
  %v1273 = vmul.f32 %v1257, 0.25
  %v1274 = vmul.f32 %v1258, 0.25
  %v1275 = vmul.f32 %v1259, 0.25
  %v1276 = vmul.f32 %v1260, 0.25
  %v1277 = vmul.f32 %v1261, 0.25
  %v1278 = vmul.f32 %v1262, 0.25
  %v1279 = vmul.f32 %v1263, 0.25
  %v1280 = vsub.f32 0.0, %v1184
  %v1281 = vsub.f32 0.0, %v1185
  %v1282 = vsub.f32 0.0, %v1186
  %v1283 = vsub.f32 0.0, %v1187
  %v1284 = vsub.f32 0.0, %v1188
  %v1285 = vsub.f32 0.0, %v1189
  %v1286 = vsub.f32 0.0, %v1190
  %v1287 = vsub.f32 0.0, %v1191
  %v1288 = vmul.f32 %v1272, %v1280
  %v1289 = vmul.f32 %v1273, %v1281
  %v1290 = vmul.f32 %v1274, %v1282
  %v1291 = vmul.f32 %v1275, %v1283
  %v1292 = vmul.f32 %v1276, %v1284
  %v1293 = vmul.f32 %v1277, %v1285
  %v1294 = vmul.f32 %v1278, %v1286
  %v1295 = vmul.f32 %v1279, %v1287
  %v1296 = vmul.f32 %v1248, 0.75
  %v1297 = vmul.f32 %v1249, 0.75
  %v1298 = vmul.f32 %v1250, 0.75
  %v1299 = vmul.f32 %v1251, 0.75
  %v1300 = vmul.f32 %v1252, 0.75
  %v1301 = vmul.f32 %v1253, 0.75
  %v1302 = vmul.f32 %v1254, 0.75
  %v1303 = vmul.f32 %v1255, 0.75
  %v1304 = vsub.f32 0.0, %v1216
  %v1305 = vsub.f32 0.0, %v1217
  %v1306 = vsub.f32 0.0, %v1218
  %v1307 = vsub.f32 0.0, %v1219
  %v1308 = vsub.f32 0.0, %v1220
  %v1309 = vsub.f32 0.0, %v1221
  %v1310 = vsub.f32 0.0, %v1222
  %v1311 = vsub.f32 0.0, %v1223
  %v1312 = vmul.f32 %v1296, %v1304
  %v1313 = vmul.f32 %v1297, %v1305
  %v1314 = vmul.f32 %v1298, %v1306
  %v1315 = vmul.f32 %v1299, %v1307
  %v1316 = vmul.f32 %v1300, %v1308
  %v1317 = vmul.f32 %v1301, %v1309
  %v1318 = vmul.f32 %v1302, %v1310
  %v1319 = vmul.f32 %v1303, %v1311
  %v1320 = vsel %vm1264, %v1288, %v1312
  %v1321 = vsel %vm1265, %v1289, %v1313
  %v1322 = vsel %vm1266, %v1290, %v1314
  %v1323 = vsel %vm1267, %v1291, %v1315
  %v1324 = vsel %vm1268, %v1292, %v1316
  %v1325 = vsel %vm1269, %v1293, %v1317
  %v1326 = vsel %vm1270, %v1294, %v1318
  %v1327 = vsel %vm1271, %v1295, %v1319
  %v1328 = vadd.f32 %v1095, %v1320
  %v1329 = vadd.f32 %v1096, %v1321
  %v1330 = vadd.f32 %v1097, %v1322
  %v1331 = vadd.f32 %v1098, %v1323
  %v1332 = vadd.f32 %v1099, %v1324
  %v1333 = vadd.f32 %v1100, %v1325
  %v1334 = vadd.f32 %v1101, %v1326
  %v1335 = vadd.f32 %v1102, %v1327
  %v1336 = vld [vmem:[#allocation2] sm:$0xff]
  %v1337 = vadd.f32 %v1328, %v1329
  %v1338 = vadd.f32 %v1337, %v1330
  %v1339 = vadd.f32 %v1338, %v1331
  %v1340 = vadd.f32 %v1339, %v1332
  %v1341 = vadd.f32 %v1340, %v1333
  %v1342 = vadd.f32 %v1341, %v1334
  %v1343 = vadd.f32 %v1342, %v1335
  %v1344 = vadd.f32 %v1336, %v1343
  %1345 = vst [vmem:[#allocation2] sm:$0xff] %v1344
  %s1346 = scalar_lea.vmem %s52, 64
  %v1347 = vld [vmem:[%s1346] sm:$0xff]
  %v1348 = vld [vmem:[%s1346 + $0x8] sm:$0xff]
  %v1349 = vld [vmem:[%s1346 + $0x10] sm:$0xff]
  %v1350 = vld [vmem:[%s1346 + $0x18] sm:$0xff]
  %v1351 = vld [vmem:[%s1346 + $0x20] sm:$0xff]
  %v1352 = vld [vmem:[%s1346 + $0x28] sm:$0xff]
  %v1353 = vld [vmem:[%s1346 + $0x30] sm:$0xff]
  %v1354 = vld [vmem:[%s1346 + $0x38] sm:$0xff]
  %s1355 = scalar_lea.vmem %s44, 640
  %v1356 = vld [vmem:[%s1355] sm:$0xff]
  %v1357 = vld [vmem:[%s1355 + $0x8] sm:$0xff]
  %v1358 = vld [vmem:[%s1355 + $0x10] sm:$0xff]
  %v1359 = vld [vmem:[%s1355 + $0x18] sm:$0xff]
  %v1360 = vld [vmem:[%s1355 + $0x20] sm:$0xff]
  %v1361 = vld [vmem:[%s1355 + $0x28] sm:$0xff]
  %v1362 = vld [vmem:[%s1355 + $0x30] sm:$0xff]
  %v1363 = vld [vmem:[%s1355 + $0x38] sm:$0xff]
  %s1364 = scalar_lea.vmem %s44, 704
  %v1365 = vld [vmem:[%s1364] sm:$0xff]
  %v1366 = vld [vmem:[%s1364 + $0x8] sm:$0xff]
  %v1367 = vld [vmem:[%s1364 + $0x10] sm:$0xff]
  %v1368 = vld [vmem:[%s1364 + $0x18] sm:$0xff]
  %v1369 = vld [vmem:[%s1364 + $0x20] sm:$0xff]
  %v1370 = vld [vmem:[%s1364 + $0x28] sm:$0xff]
  %v1371 = vld [vmem:[%s1364 + $0x30] sm:$0xff]
  %v1372 = vld [vmem:[%s1364 + $0x38] sm:$0xff]
  %vm1373 = vcmp.eq.s32.totalorder %v1347, 0
  %vm1374 = vcmp.eq.s32.totalorder %v1348, 0
  %vm1375 = vcmp.eq.s32.totalorder %v1349, 0
  %vm1376 = vcmp.eq.s32.totalorder %v1350, 0
  %vm1377 = vcmp.eq.s32.totalorder %v1351, 0
  %vm1378 = vcmp.eq.s32.totalorder %v1352, 0
  %vm1379 = vcmp.eq.s32.totalorder %v1353, 0
  %vm1380 = vcmp.eq.s32.totalorder %v1354, 0
  %v1381 = vsel %vm1373, %v1356, %v1365
  %v1382 = vsel %vm1374, %v1357, %v1366
  %v1383 = vsel %vm1375, %v1358, %v1367
  %v1384 = vsel %vm1376, %v1359, %v1368
  %v1385 = vsel %vm1377, %v1360, %v1369
  %v1386 = vsel %vm1378, %v1361, %v1370
  %v1387 = vsel %vm1379, %v1362, %v1371
  %v1388 = vsel %vm1380, %v1363, %v1372
  %v1389 = vadd.f32 %v1356, %v1365
  %v1390 = vadd.f32 %v1357, %v1366
  %v1391 = vadd.f32 %v1358, %v1367
  %v1392 = vadd.f32 %v1359, %v1368
  %v1393 = vadd.f32 %v1360, %v1369
  %v1394 = vadd.f32 %v1361, %v1370
  %v1395 = vadd.f32 %v1362, %v1371
  %v1396 = vadd.f32 %v1363, %v1372
  %v1397 = vsub.f32 %v1389, %v1381
  %v1398 = vsub.f32 %v1390, %v1382
  %v1399 = vsub.f32 %v1391, %v1383
  %v1400 = vsub.f32 %v1392, %v1384
  %v1401 = vsub.f32 %v1393, %v1385
  %v1402 = vsub.f32 %v1394, %v1386
  %v1403 = vsub.f32 %v1395, %v1387
  %v1404 = vsub.f32 %v1396, %v1388
  %v1405 = vsub.f32 %v1397, %v1381
  %v1406 = vsub.f32 %v1398, %v1382
  %v1407 = vsub.f32 %v1399, %v1383
  %v1408 = vsub.f32 %v1400, %v1384
  %v1409 = vsub.f32 %v1401, %v1385
  %v1410 = vsub.f32 %v1402, %v1386
  %v1411 = vsub.f32 %v1403, %v1387
  %v1412 = vsub.f32 %v1404, %v1388
  %v1413 = vmax.f32 %v1405, 0.0
  %v1414 = vmax.f32 %v1406, 0.0
  %v1415 = vmax.f32 %v1407, 0.0
  %v1416 = vmax.f32 %v1408, 0.0
  %v1417 = vmax.f32 %v1409, 0.0
  %v1418 = vmax.f32 %v1410, 0.0
  %v1419 = vmax.f32 %v1411, 0.0
  %v1420 = vmax.f32 %v1412, 0.0
  %v1421 = vand.u32 2147483647, %v1405
  %v1422 = vand.u32 2147483647, %v1406
  %v1423 = vand.u32 2147483647, %v1407
  %v1424 = vand.u32 2147483647, %v1408
  %v1425 = vand.u32 2147483647, %v1409
  %v1426 = vand.u32 2147483647, %v1410
  %v1427 = vand.u32 2147483647, %v1411
  %v1428 = vand.u32 2147483647, %v1412
  %v1429 = vsub.f32 0.0, %v1421
  %v1430 = vsub.f32 0.0, %v1422
  %v1431 = vsub.f32 0.0, %v1423
  %v1432 = vsub.f32 0.0, %v1424
  %v1433 = vsub.f32 0.0, %v1425
  %v1434 = vsub.f32 0.0, %v1426
  %v1435 = vsub.f32 0.0, %v1427
  %v1436 = vsub.f32 0.0, %v1428
  %v1437 = vmul.f32 %v1429, 1.442695
  %v1438 = vpow.pop %v1437
  %v1439 = vmul.f32 %v1430, 1.442695
  %v1440 = vpow.pop %v1439
  %v1441 = vmul.f32 %v1431, 1.442695
  %v1442 = vpow.pop %v1441
  %v1443 = vmul.f32 %v1432, 1.442695
  %v1444 = vpow.pop %v1443
  %v1445 = vmul.f32 %v1433, 1.442695
  %v1446 = vpow.pop %v1445
  %v1447 = vmul.f32 %v1434, 1.442695
  %v1448 = vpow.pop %v1447
  %v1449 = vmul.f32 %v1435, 1.442695
  %v1450 = vpow.pop %v1449
  %v1451 = vmul.f32 %v1436, 1.442695
  %v1452 = vpow.pop %v1451
  %v1453 = vadd.f32 %v1438, 1.0
  %v1454 = vadd.f32 %v1440, 1.0
  %v1455 = vadd.f32 %v1442, 1.0
  %v1456 = vadd.f32 %v1444, 1.0
  %v1457 = vadd.f32 %v1446, 1.0
  %v1458 = vadd.f32 %v1448, 1.0
  %v1459 = vadd.f32 %v1450, 1.0
  %v1460 = vadd.f32 %v1452, 1.0
  %v1461 = vlog2.pop %v1453
  %v1462 = vmul.f32 %v1461, 0.6931472
  %v1463 = vlog2.pop %v1454
  %v1464 = vmul.f32 %v1463, 0.6931472
  %v1465 = vlog2.pop %v1455
  %v1466 = vmul.f32 %v1465, 0.6931472
  %v1467 = vlog2.pop %v1456
  %v1468 = vmul.f32 %v1467, 0.6931472
  %v1469 = vlog2.pop %v1457
  %v1470 = vmul.f32 %v1469, 0.6931472
  %v1471 = vlog2.pop %v1458
  %v1472 = vmul.f32 %v1471, 0.6931472
  %v1473 = vlog2.pop %v1459
  %v1474 = vmul.f32 %v1473, 0.6931472
  %v1475 = vlog2.pop %v1460
  %v1476 = vmul.f32 %v1475, 0.6931472
  %v1477 = vadd.f32 %v1413, %v1462
  %v1478 = vadd.f32 %v1414, %v1464
  %v1479 = vadd.f32 %v1415, %v1466
  %v1480 = vadd.f32 %v1416, %v1468
  %v1481 = vadd.f32 %v1417, %v1470
  %v1482 = vadd.f32 %v1418, %v1472
  %v1483 = vadd.f32 %v1419, %v1474
  %v1484 = vadd.f32 %v1420, %v1476
  %v1485 = vld [vmem:[#allocation4] sm:$0xff]
  %v1486 = vadd.f32 %v1477, %v1478
  %v1487 = vadd.f32 %v1486, %v1479
  %v1488 = vadd.f32 %v1487, %v1480
  %v1489 = vadd.f32 %v1488, %v1481
  %v1490 = vadd.f32 %v1489, %v1482
  %v1491 = vadd.f32 %v1490, %v1483
  %v1492 = vadd.f32 %v1491, %v1484
  %v1493 = vadd.f32 %v1485, %v1492
  %1494 = vst [vmem:[#allocation4] sm:$0xff] %v1493
  // Predicated region
  $region14: #{pointpillars_losses.1} parent=0 // pred_check
    %p1495 = pneg %p55
  $region15: #{pointpillars_losses.1} parent=0 // pred_check_branch
    %1497 = sbr.rel (%p1495) target = $region17
  $region16: #{pointpillars_losses.1} parent=0 // pred_region
    %v1498 = vld [vmem:[#allocation2] sm:$0xff]
    %1499 = vadd.xlane.f32.xlu0 %v1498
    %v1500 = vpop.xlane.xlu0 %1499
    %v1501 = vrot.slane %v1500, 4
    %v1502 = vadd.f32 %v1500, %v1501
    %v1503 = vrot.slane %v1502, 2
    %v1504 = vadd.f32 %v1502, %v1503
    %v1505 = vrot.slane %v1504, 1
    %v1506 = vadd.f32 %v1504, %v1505
    %s1507 = vtos %v1506
    %v1508 = vld [vmem:[#allocation3] sm:$0xff]
    %1509 = vadd.xlane.f32.xlu0 %v1508
    %v1510 = vpop.xlane.xlu0 %1509
    %v1511 = vrot.slane %v1510, 4
    %v1512 = vadd.f32 %v1510, %v1511
    %v1513 = vrot.slane %v1512, 2
    %v1514 = vadd.f32 %v1512, %v1513
    %v1515 = vrot.slane %v1514, 1
    %v1516 = vadd.f32 %v1514, %v1515
    %s1517 = vtos %v1516
    %v1518 = vld [vmem:[#allocation4] sm:$0xff]
    %1519 = vadd.xlane.f32.xlu0 %v1518
    %v1520 = vpop.xlane.xlu0 %1519
    %v1521 = vrot.slane %v1520, 4
    %v1522 = vadd.f32 %v1520, %v1521
    %v1523 = vrot.slane %v1522, 2
    %v1524 = vadd.f32 %v1522, %v1523
    %v1525 = vrot.slane %v1524, 1
    %v1526 = vadd.f32 %v1524, %v1525
    %s1527 = vtos %v1526
    %v1528 = vlaneseq
    %v1529 = vand.u32 %v1528, 127
    %vm1530 = vcmp.eq.s32.totalorder %v1529, 0
    %vm1531 = vcmp.eq.s32.totalorder %v1529, 1
    %vm1532 = vcmp.eq.s32.totalorder %v1529, 2
    %v1533 = vstv %s1527
    %v1534 = vsel %vm1532, %v1533, 0.0
    %v1535 = vstv %s1517
    %v1536 = vsel %vm1531, %v1535, %v1534
    %v1537 = vstv %s1507
    %v1538 = vsel %vm1530, %v1537, %v1536
    %1539 = vst [vmem:[%s2] sm:$0xff] %v1538
  $region17: #{pointpillars_losses.1} parent=0 // pred_fallthru
    _
  // Predicated region
  $region18: #{pointpillars_losses.1} parent=0 // pred_check
    _
  $region19: #{pointpillars_losses.1} parent=0 // pred_check_branch
    %1541 = sbr.rel (0) target = $region21
  $region20: #{pointpillars_losses.1} parent=0 // pred_region
    _
  $region21: #{pointpillars_losses.1} parent=0 // pred_fallthru
    _
  // Predicated region
  $region22: #{pointpillars_losses.1} parent=0 // pred_check
    _
  $region23: #{pointpillars_losses.1} parent=0 // pred_check_branch
    %1543 = sbr.rel (0) target = $region25
  $region24: #{pointpillars_losses.1} parent=0 // pred_region
    _
  $region25: #{pointpillars_losses.1} parent=0 // pred_fallthru
    _

</llo_original>
